<compile_context>
chip_gen: v6e
topology: v6e:2x2x1
jax: 0.10.0
libtpu: 0.0.40
codegen_flags: <defaults>
</compile_context>

<pallas_src>
import jax
import jax.numpy as jnp
from jax import lax
from jax.experimental import pallas as pl
from jax.experimental.pallas import tpu as pltpu

# ---- small, deterministic hyperparameters (shapes consistent with CNNLSTM.__init__) ----
VOCAB_SIZE = 16
EMBED_DIM = 32       # embed_dim
HIDDEN_DIM = 32      # hidden_dim
NUM_CLASSES = 5      # num_classes
NUM_FILTERS = 16     # num_filters
FILTER_SIZES = (2, 3, 4, 5)
BATCH = 2
SEQ_LEN = 8
COMBINED_DIM = 2 * HIDDEN_DIM + NUM_FILTERS * len(FILTER_SIZES)

_G = 8 * HIDDEN_DIM                       # fused gate width: [i_f i_b f_f f_b g_f g_b o_f o_b]
_F4 = NUM_FILTERS * len(FILTER_SIZES)     # consolidated conv output width
_KMAX = max(FILTER_SIZES)                 # number of tap matmuls


def cnn_lstm_kernel(emb_ref,                       # (B, T, E)        bf16 embedded tokens
                    w_in_ref, b_in_ref,            # (E, 2G) bf16, (1, 2G) f32  fused input proj
                    whh_ref,                       # (2H, G) bf16     block-diagonal recurrent W
                    w_taps_ref, b_conv_ref,        # (KMAX, E, 4F) bf16, (1, 4F) f32
                    limit_ref,                     # (1, 4F) int32    per-column valid length
                    wfc_ref, bfc_ref,              # (D, C) bf16, (1, C) f32
                    out_ref):                      # (B, C) f32
    B, T, E = emb_ref.shape
    H2 = 2 * HIDDEN_DIM                            # fused hidden width [fwd | bwd]
    G = _G

    emb = emb_ref[...]                             # (B, T, E) bf16
    emb_flat = emb.reshape(B * T, E)

    # -------- hoisted LSTM input projections for BOTH directions: one 512-wide matmul --------
    gi = jnp.dot(emb_flat, w_in_ref[...], preferred_element_type=jnp.float32)
    gi = gi + b_in_ref[...]                        # biases folded in once (not per step)
    gi = gi.reshape(B, T, 2 * G)                   # [:, :, 0:G]=fwd proj, [:, :, G:2G]=bwd proj

    whh = whh_ref[...]                             # (2H, G) bf16

    # -------- fused bidirectional recurrence, fully unrolled over static T --------
    c = None
    h = None
    pooled = None
    for s in range(T):
        # fwd consumes time s, bwd consumes time T-1-s; zero lane-slots make the add exact
        gates = gi[:, s, 0:G] + gi[:, T - 1 - s, G:2 * G]          # (B, G) f32
        if h is not None:
            gates = gates + jnp.dot(h.astype(jnp.bfloat16), whh,
                                    preferred_element_type=jnp.float32)
        sig = jax.nn.sigmoid(gates)                # full-width transcendentals -> EUP slot
        th = jnp.tanh(gates)
        i_g = sig[:, 0:H2]                         # [i_f | i_b]  (64-lane aligned slices)
        f_g = sig[:, H2:2 * H2]
        g_g = th[:, 2 * H2:3 * H2]
        o_g = sig[:, 3 * H2:4 * H2]
        c = i_g * g_g if c is None else f_g * c + i_g * g_g
        h = o_g * jnp.tanh(c)                      # (B, 2H)
        pooled = h if pooled is None else jnp.maximum(pooled, h)   # online max over time
    lstm_pooled = pooled                           # (B, 2H) = [max_t h_fwd | max_t h_bwd]

    # -------- consolidated conv branches: 5 tap matmuls into one (B, T, 4F) accumulator --------
    emb_pad = jnp.concatenate(
        [emb, jnp.zeros((B, _KMAX - 1, E), emb.dtype)], axis=1)    # (B, T+KMAX-1, E)
    acc = None
    for k in range(_KMAX):                         # static unroll over taps
        x_k = emb_pad[:, k:k + T, :].reshape(B * T, E)
        contrib = jnp.dot(x_k, w_taps_ref[k], preferred_element_type=jnp.float32)
        acc = contrib if acc is None else acc + contrib
    acc = acc.reshape(B, T, _F4) + b_conv_ref[...].reshape(1, 1, _F4)
    acc = jnp.maximum(acc, 0.0)                    # ReLU (all values >= 0)
    pos = lax.broadcasted_iota(jnp.int32, (1, T, _F4), 1)
    valid = pos < limit_ref[...].reshape(1, 1, _F4)                # L = T - fs + 1 per branch
    cnn_pooled = jnp.max(jnp.where(valid, acc, 0.0), axis=1)       # (B, 4F); 0 safe post-ReLU

    # -------- concat + Linear (dropout is identity at inference / eval mode) --------
    combined = jnp.concatenate([lstm_pooled, cnn_pooled], axis=1)  # (B, 2H + 4F)
    out = (jnp.dot(combined.astype(jnp.bfloat16), wfc_ref[...],
                   preferred_element_type=jnp.float32)
           + bfc_ref[...])
    out_ref[...] = out.astype(out_ref.dtype)


def make_params(key):
    H, E, F, C = HIDDEN_DIM, EMBED_DIM, NUM_FILTERS, NUM_CLASSES
    keys = jax.random.split(key, 32)

    def init(k, shape, scale=0.1):
        return jax.random.normal(k, shape, jnp.float32) * scale

    params = {}
    emb_table = init(keys[0], (VOCAB_SIZE, E))
    params['embedding'] = emb_table.at[0].set(0.0)                 # padding_idx=0

    # LSTM weights in PyTorch layout: W_ih (4H,E), W_hh (4H,H); b = b_ih + b_hh folded
    params['wih_f'] = init(keys[1], (4 * H, E))
    params['whh_f'] = init(keys[2], (4 * H, H))
    params['b_f'] = init(keys[3], (4 * H,))
    params['wih_b'] = init(keys[4], (4 * H, E))
    params['whh_b'] = init(keys[5], (4 * H, H))
    params['b_b'] = init(keys[6], (4 * H,))

    # Conv1d weights in PyTorch layout: (out_channels=F, in_channels=E, kernel_size=fs)
    for i, fs in enumerate(FILTER_SIZES):
        params[f'wc{fs}'] = init(keys[7 + 2 * i], (F, E, fs))
        params[f'bc{fs}'] = init(keys[8 + 2 * i], (F,))

    # Linear: (num_classes, combined_dim)
    params['wfc'] = init(keys[20], (C, COMBINED_DIM))
    params['bfc'] = init(keys[21], (C,))
    return params


def prepare_fused_params(params):
    """Host-side restructuring: block-diagonal fused LSTM weights (permuted gate layout
    [i_f i_b f_f f_b g_f g_b o_f o_b]) and per-tap consolidated conv weights."""
    H, E, F = HIDDEN_DIM, EMBED_DIM, NUM_FILTERS
    G = _G

    wih_f_t = params['wih_f'].T        # (E, 4H), PyTorch gate column order [i, f, g, o]
    wih_b_t = params['wih_b'].T
    whh_f_t = params['whh_f'].T        # (H, 4H)
    whh_b_t = params['whh_b'].T

    w_in_f = jnp.zeros((E, G), jnp.float32)     # fwd proj -> fwd gate slots, zeros elsewhere
    w_in_b = jnp.zeros((E, G), jnp.float32)     # bwd proj -> bwd gate slots
    whh_bd = jnp.zeros((2 * H, G), jnp.float32) # block-diagonal recurrent weight
    b_in_f = jnp.zeros((G,), jnp.float32)
    b_in_b = jnp.zeros((G,), jnp.float32)
    for g in range(4):                           # gate order i, f, g, o
        fwd = slice(g * 2 * H, g * 2 * H + H)
        bwd = slice(g * 2 * H + H, (g + 1) * 2 * H)
        src = slice(g * H, (g + 1) * H)
        w_in_f = w_in_f.at[:, fwd].set(wih_f_t[:, src])
        w_in_b = w_in_b.at[:, bwd].set(wih_b_t[:, src])
        whh_bd = whh_bd.at[0:H, fwd].set(whh_f_t[:, src])
        whh_bd = whh_bd.at[H:2 * H, bwd].set(whh_b_t[:, src])
        b_in_f = b_in_f.at[fwd].set(params['b_f'][src])
        b_in_b = b_in_b.at[bwd].set(params['b_b'][src])

    # conv: one (E, 4F) weight per tap offset k (zero columns for branches with fs <= k)
    w_taps = jnp.zeros((_KMAX, E, _F4), jnp.float32)
    for bi, fs in enumerate(FILTER_SIZES):
        w = params[f'wc{fs}']                    # (F, E, fs)
        for k in range(fs):
            w_taps = w_taps.at[k, :, bi * F:(bi + 1) * F].set(w[:, :, k].T)
    b_conv = jnp.concatenate([params[f'bc{fs}'] for fs in FILTER_SIZES]).reshape(1, _F4)
    limits = jnp.concatenate(
        [jnp.full((F,), SEQ_LEN - fs + 1, jnp.int32) for fs in FILTER_SIZES]).reshape(1, _F4)

    return {
        'embedding': params['embedding'],
        'w_in': jnp.concatenate([w_in_f, w_in_b], axis=1).astype(jnp.bfloat16),   # (E, 2G)
        'b_in': jnp.concatenate([b_in_f, b_in_b]).reshape(1, 2 * G),              # (1, 2G)
        'whh': whh_bd.astype(jnp.bfloat16),                                       # (2H, G)
        'w_taps': w_taps.astype(jnp.bfloat16),                                    # (KMAX, E, 4F)
        'b_conv': b_conv,                                                         # (1, 4F)
        'conv_limit': limits,                                                     # (1, 4F) int32
        'wfc': params['wfc'].T.astype(jnp.bfloat16),                              # (D, C)
        'bfc': params['bfc'].reshape(1, -1),                                      # (1, C)
    }


def cnn_lstm_forward(x, fused):
    # Embedding gather (glue, outside the kernel): (B, T) int32 -> (B, T, E), bf16 MXU operand
    emb = jnp.take(fused['embedding'], x, axis=0).astype(jnp.bfloat16)

    args = (emb, fused['w_in'], fused['b_in'], fused['whh'],
            fused['w_taps'], fused['b_conv'], fused['conv_limit'],
            fused['wfc'], fused['bfc'])

    vmem = pl.BlockSpec(memory_space=pltpu.MemorySpace.VMEM)
    return pl.pallas_call(
        cnn_lstm_kernel,
        out_shape=jax.ShapeDtypeStruct((x.shape[0], NUM_CLASSES), jnp.float32),
        in_specs=[vmem] * len(args),
        out_specs=vmem,
    )(*args)


if __name__ == "__main__":
    key = jax.random.PRNGKey(0)
    kx, kp = jax.random.split(key)
    x = jax.random.randint(kx, (BATCH, SEQ_LEN), 0, VOCAB_SIZE, dtype=jnp.int32)
    params = make_params(kp)
    fused = prepare_fused_params(params)

    out = jax.jit(cnn_lstm_forward)(x, fused)
    out = jax.block_until_ready(out)

    assert out.shape == (BATCH, NUM_CLASSES)
    assert bool(jnp.all(jnp.isfinite(out)))
    print("KERNEL_OK")
</pallas_src>

<mosaic_0001>
module attributes {stable_mosaic.version = 11 : i64} {
  func.func @cnn_lstm_kernel(%arg0: memref<2x8x32xbf16, #tpu.memory_space<vmem>>, %arg1: memref<32x512xbf16, #tpu.memory_space<vmem>>, %arg2: memref<1x512xf32, #tpu.memory_space<vmem>>, %arg3: memref<64x256xbf16, #tpu.memory_space<vmem>>, %arg4: memref<5x32x64xbf16, #tpu.memory_space<vmem>>, %arg5: memref<1x64xf32, #tpu.memory_space<vmem>>, %arg6: memref<1x64xi32, #tpu.memory_space<vmem>>, %arg7: memref<128x5xbf16, #tpu.memory_space<vmem>>, %arg8: memref<1x5xf32, #tpu.memory_space<vmem>>, %arg9: memref<2x5xf32, #tpu.memory_space<vmem>>) attributes {dimension_semantics = [], scalar_prefetch = 0 : i64, scratch_operands = 0 : i64, tpu.core_type = #tpu.core_type<tc>} {
    %c0 = arith.constant 0 : index
    %c0_0 = arith.constant 0 : index
    %c0_1 = arith.constant 0 : index
    %0 = vector.load %arg0[%c0, %c0_0, %c0_1] : memref<2x8x32xbf16, #tpu.memory_space<vmem>>, vector<2x8x32xbf16>
    %1 = vector.shape_cast %0 : vector<2x8x32xbf16> to vector<16x32xbf16>
    %c0_2 = arith.constant 0 : index
    %c0_3 = arith.constant 0 : index
    %2 = vector.load %arg1[%c0_2, %c0_3] : memref<32x512xbf16, #tpu.memory_space<vmem>>, vector<32x512xbf16>
    %cst = arith.constant dense<0.000000e+00> : vector<16x512xf32>
    %3 = tpu.matmul %1, %2, %cst {dimension_numbers = #tpu.dot_dimension_numbers<[1], [0], [0], [1], [0, 0, 1, 1], [], []>} : vector<16x32xbf16>, vector<32x512xbf16>, vector<16x512xf32> -> vector<16x512xf32>
    %c0_4 = arith.constant 0 : index
    %c0_5 = arith.constant 0 : index
    %4 = vector.load %arg2[%c0_4, %c0_5] : memref<1x512xf32, #tpu.memory_space<vmem>>, vector<1x512xf32>
    %5 = vector.broadcast %4 : vector<1x512xf32> to vector<16x512xf32>
    %6 = arith.addf %3, %5 : vector<16x512xf32>
    %7 = vector.shape_cast %6 : vector<16x512xf32> to vector<2x8x512xf32>
    %c0_6 = arith.constant 0 : index
    %c0_7 = arith.constant 0 : index
    %8 = vector.load %arg3[%c0_6, %c0_7] : memref<64x256xbf16, #tpu.memory_space<vmem>>, vector<64x256xbf16>
    %9 = vector.extract_strided_slice %7 {offsets = [0, 0, 0], sizes = [2, 1, 256], strides = [1, 1, 1]} : vector<2x8x512xf32> to vector<2x1x256xf32>
    %10 = vector.shape_cast %9 : vector<2x1x256xf32> to vector<2x256xf32>
    %11 = vector.extract_strided_slice %7 {offsets = [0, 7, 256], sizes = [2, 1, 256], strides = [1, 1, 1]} : vector<2x8x512xf32> to vector<2x1x256xf32>
    %12 = vector.shape_cast %11 : vector<2x1x256xf32> to vector<2x256xf32>
    %13 = arith.addf %10, %12 : vector<2x256xf32>
    %14 = arith.negf %13 : vector<2x256xf32>
    %15 = math.exp %14 : vector<2x256xf32>
    %cst_8 = arith.constant 1.000000e+00 : f32
    %16 = vector.broadcast %cst_8 : f32 to vector<2x256xf32>
    %17 = arith.addf %16, %15 : vector<2x256xf32>
    %18 = arith.divf %16, %17 : vector<2x256xf32>
    %19 = math.tanh %13 : vector<2x256xf32>
    %20 = vector.extract_strided_slice %18 {offsets = [0, 0], sizes = [2, 64], strides = [1, 1]} : vector<2x256xf32> to vector<2x64xf32>
    %21 = vector.extract_strided_slice %19 {offsets = [0, 128], sizes = [2, 64], strides = [1, 1]} : vector<2x256xf32> to vector<2x64xf32>
    %22 = vector.extract_strided_slice %18 {offsets = [0, 192], sizes = [2, 64], strides = [1, 1]} : vector<2x256xf32> to vector<2x64xf32>
    %23 = arith.mulf %20, %21 : vector<2x64xf32>
    %24 = math.tanh %23 : vector<2x64xf32>
    %25 = arith.mulf %22, %24 : vector<2x64xf32>
    %26 = vector.extract_strided_slice %7 {offsets = [0, 1, 0], sizes = [2, 1, 256], strides = [1, 1, 1]} : vector<2x8x512xf32> to vector<2x1x256xf32>
    %27 = vector.shape_cast %26 : vector<2x1x256xf32> to vector<2x256xf32>
    %28 = vector.extract_strided_slice %7 {offsets = [0, 6, 256], sizes = [2, 1, 256], strides = [1, 1, 1]} : vector<2x8x512xf32> to vector<2x1x256xf32>
    %29 = vector.shape_cast %28 : vector<2x1x256xf32> to vector<2x256xf32>
    %30 = arith.addf %27, %29 : vector<2x256xf32>
    %31 = arith.truncf %25 : vector<2x64xf32> to vector<2x64xbf16>
    %cst_9 = arith.constant dense<0.000000e+00> : vector<2x256xf32>
    %32 = tpu.matmul %31, %8, %cst_9 {dimension_numbers = #tpu.dot_dimension_numbers<[1], [0], [0], [1], [0, 0, 1, 1], [], []>} : vector<2x64xbf16>, vector<64x256xbf16>, vector<2x256xf32> -> vector<2x256xf32>
    %33 = arith.addf %30, %32 : vector<2x256xf32>
    %34 = arith.negf %33 : vector<2x256xf32>
    %35 = math.exp %34 : vector<2x256xf32>
    %cst_10 = arith.constant 1.000000e+00 : f32
    %36 = vector.broadcast %cst_10 : f32 to vector<2x256xf32>
    %37 = arith.addf %36, %35 : vector<2x256xf32>
    %38 = arith.divf %36, %37 : vector<2x256xf32>
    %39 = math.tanh %33 : vector<2x256xf32>
    %40 = vector.extract_strided_slice %38 {offsets = [0, 0], sizes = [2, 64], strides = [1, 1]} : vector<2x256xf32> to vector<2x64xf32>
    %41 = vector.extract_strided_slice %38 {offsets = [0, 64], sizes = [2, 64], strides = [1, 1]} : vector<2x256xf32> to vector<2x64xf32>
    %42 = vector.extract_strided_slice %39 {offsets = [0, 128], sizes = [2, 64], strides = [1, 1]} : vector<2x256xf32> to vector<2x64xf32>
    %43 = vector.extract_strided_slice %38 {offsets = [0, 192], sizes = [2, 64], strides = [1, 1]} : vector<2x256xf32> to vector<2x64xf32>
    %44 = arith.mulf %41, %23 : vector<2x64xf32>
    %45 = arith.mulf %40, %42 : vector<2x64xf32>
    %46 = arith.addf %44, %45 : vector<2x64xf32>
    %47 = math.tanh %46 : vector<2x64xf32>
    %48 = arith.mulf %43, %47 : vector<2x64xf32>
    %49 = arith.maximumf %25, %48 : vector<2x64xf32>
    %50 = vector.extract_strided_slice %7 {offsets = [0, 2, 0], sizes = [2, 1, 256], strides = [1, 1, 1]} : vector<2x8x512xf32> to vector<2x1x256xf32>
    %51 = vector.shape_cast %50 : vector<2x1x256xf32> to vector<2x256xf32>
    %52 = vector.extract_strided_slice %7 {offsets = [0, 5, 256], sizes = [2, 1, 256], strides = [1, 1, 1]} : vector<2x8x512xf32> to vector<2x1x256xf32>
    %53 = vector.shape_cast %52 : vector<2x1x256xf32> to vector<2x256xf32>
    %54 = arith.addf %51, %53 : vector<2x256xf32>
    %55 = arith.truncf %48 : vector<2x64xf32> to vector<2x64xbf16>
    %cst_11 = arith.constant dense<0.000000e+00> : vector<2x256xf32>
    %56 = tpu.matmul %55, %8, %cst_11 {dimension_numbers = #tpu.dot_dimension_numbers<[1], [0], [0], [1], [0, 0, 1, 1], [], []>} : vector<2x64xbf16>, vector<64x256xbf16>, vector<2x256xf32> -> vector<2x256xf32>
    %57 = arith.addf %54, %56 : vector<2x256xf32>
    %58 = arith.negf %57 : vector<2x256xf32>
    %59 = math.exp %58 : vector<2x256xf32>
    %cst_12 = arith.constant 1.000000e+00 : f32
    %60 = vector.broadcast %cst_12 : f32 to vector<2x256xf32>
    %61 = arith.addf %60, %59 : vector<2x256xf32>
    %62 = arith.divf %60, %61 : vector<2x256xf32>
    %63 = math.tanh %57 : vector<2x256xf32>
    %64 = vector.extract_strided_slice %62 {offsets = [0, 0], sizes = [2, 64], strides = [1, 1]} : vector<2x256xf32> to vector<2x64xf32>
    %65 = vector.extract_strided_slice %62 {offsets = [0, 64], sizes = [2, 64], strides = [1, 1]} : vector<2x256xf32> to vector<2x64xf32>
    %66 = vector.extract_strided_slice %63 {offsets = [0, 128], sizes = [2, 64], strides = [1, 1]} : vector<2x256xf32> to vector<2x64xf32>
    %67 = vector.extract_strided_slice %62 {offsets = [0, 192], sizes = [2, 64], strides = [1, 1]} : vector<2x256xf32> to vector<2x64xf32>
    %68 = arith.mulf %65, %46 : vector<2x64xf32>
    %69 = arith.mulf %64, %66 : vector<2x64xf32>
    %70 = arith.addf %68, %69 : vector<2x64xf32>
    %71 = math.tanh %70 : vector<2x64xf32>
    %72 = arith.mulf %67, %71 : vector<2x64xf32>
    %73 = arith.maximumf %49, %72 : vector<2x64xf32>
    %74 = vector.extract_strided_slice %7 {offsets = [0, 3, 0], sizes = [2, 1, 256], strides = [1, 1, 1]} : vector<2x8x512xf32> to vector<2x1x256xf32>
    %75 = vector.shape_cast %74 : vector<2x1x256xf32> to vector<2x256xf32>
    %76 = vector.extract_strided_slice %7 {offsets = [0, 4, 256], sizes = [2, 1, 256], strides = [1, 1, 1]} : vector<2x8x512xf32> to vector<2x1x256xf32>
    %77 = vector.shape_cast %76 : vector<2x1x256xf32> to vector<2x256xf32>
    %78 = arith.addf %75, %77 : vector<2x256xf32>
    %79 = arith.truncf %72 : vector<2x64xf32> to vector<2x64xbf16>
    %cst_13 = arith.constant dense<0.000000e+00> : vector<2x256xf32>
    %80 = tpu.matmul %79, %8, %cst_13 {dimension_numbers = #tpu.dot_dimension_numbers<[1], [0], [0], [1], [0, 0, 1, 1], [], []>} : vector<2x64xbf16>, vector<64x256xbf16>, vector<2x256xf32> -> vector<2x256xf32>
    %81 = arith.addf %78, %80 : vector<2x256xf32>
    %82 = arith.negf %81 : vector<2x256xf32>
    %83 = math.exp %82 : vector<2x256xf32>
    %cst_14 = arith.constant 1.000000e+00 : f32
    %84 = vector.broadcast %cst_14 : f32 to vector<2x256xf32>
    %85 = arith.addf %84, %83 : vector<2x256xf32>
    %86 = arith.divf %84, %85 : vector<2x256xf32>
    %87 = math.tanh %81 : vector<2x256xf32>
    %88 = vector.extract_strided_slice %86 {offsets = [0, 0], sizes = [2, 64], strides = [1, 1]} : vector<2x256xf32> to vector<2x64xf32>
    %89 = vector.extract_strided_slice %86 {offsets = [0, 64], sizes = [2, 64], strides = [1, 1]} : vector<2x256xf32> to vector<2x64xf32>
    %90 = vector.extract_strided_slice %87 {offsets = [0, 128], sizes = [2, 64], strides = [1, 1]} : vector<2x256xf32> to vector<2x64xf32>
    %91 = vector.extract_strided_slice %86 {offsets = [0, 192], sizes = [2, 64], strides = [1, 1]} : vector<2x256xf32> to vector<2x64xf32>
    %92 = arith.mulf %89, %70 : vector<2x64xf32>
    %93 = arith.mulf %88, %90 : vector<2x64xf32>
    %94 = arith.addf %92, %93 : vector<2x64xf32>
    %95 = math.tanh %94 : vector<2x64xf32>
    %96 = arith.mulf %91, %95 : vector<2x64xf32>
    %97 = arith.maximumf %73, %96 : vector<2x64xf32>
    %98 = vector.extract_strided_slice %7 {offsets = [0, 4, 0], sizes = [2, 1, 256], strides = [1, 1, 1]} : vector<2x8x512xf32> to vector<2x1x256xf32>
    %99 = vector.shape_cast %98 : vector<2x1x256xf32> to vector<2x256xf32>
    %100 = vector.extract_strided_slice %7 {offsets = [0, 3, 256], sizes = [2, 1, 256], strides = [1, 1, 1]} : vector<2x8x512xf32> to vector<2x1x256xf32>
    %101 = vector.shape_cast %100 : vector<2x1x256xf32> to vector<2x256xf32>
    %102 = arith.addf %99, %101 : vector<2x256xf32>
    %103 = arith.truncf %96 : vector<2x64xf32> to vector<2x64xbf16>
    %cst_15 = arith.constant dense<0.000000e+00> : vector<2x256xf32>
    %104 = tpu.matmul %103, %8, %cst_15 {dimension_numbers = #tpu.dot_dimension_numbers<[1], [0], [0], [1], [0, 0, 1, 1], [], []>} : vector<2x64xbf16>, vector<64x256xbf16>, vector<2x256xf32> -> vector<2x256xf32>
    %105 = arith.addf %102, %104 : vector<2x256xf32>
    %106 = arith.negf %105 : vector<2x256xf32>
    %107 = math.exp %106 : vector<2x256xf32>
    %cst_16 = arith.constant 1.000000e+00 : f32
    %108 = vector.broadcast %cst_16 : f32 to vector<2x256xf32>
    %109 = arith.addf %108, %107 : vector<2x256xf32>
    %110 = arith.divf %108, %109 : vector<2x256xf32>
    %111 = math.tanh %105 : vector<2x256xf32>
    %112 = vector.extract_strided_slice %110 {offsets = [0, 0], sizes = [2, 64], strides = [1, 1]} : vector<2x256xf32> to vector<2x64xf32>
    %113 = vector.extract_strided_slice %110 {offsets = [0, 64], sizes = [2, 64], strides = [1, 1]} : vector<2x256xf32> to vector<2x64xf32>
    %114 = vector.extract_strided_slice %111 {offsets = [0, 128], sizes = [2, 64], strides = [1, 1]} : vector<2x256xf32> to vector<2x64xf32>
    %115 = vector.extract_strided_slice %110 {offsets = [0, 192], sizes = [2, 64], strides = [1, 1]} : vector<2x256xf32> to vector<2x64xf32>
    %116 = arith.mulf %113, %94 : vector<2x64xf32>
    %117 = arith.mulf %112, %114 : vector<2x64xf32>
    %118 = arith.addf %116, %117 : vector<2x64xf32>
    %119 = math.tanh %118 : vector<2x64xf32>
    %120 = arith.mulf %115, %119 : vector<2x64xf32>
    %121 = arith.maximumf %97, %120 : vector<2x64xf32>
    %122 = vector.extract_strided_slice %7 {offsets = [0, 5, 0], sizes = [2, 1, 256], strides = [1, 1, 1]} : vector<2x8x512xf32> to vector<2x1x256xf32>
    %123 = vector.shape_cast %122 : vector<2x1x256xf32> to vector<2x256xf32>
    %124 = vector.extract_strided_slice %7 {offsets = [0, 2, 256], sizes = [2, 1, 256], strides = [1, 1, 1]} : vector<2x8x512xf32> to vector<2x1x256xf32>
    %125 = vector.shape_cast %124 : vector<2x1x256xf32> to vector<2x256xf32>
    %126 = arith.addf %123, %125 : vector<2x256xf32>
    %127 = arith.truncf %120 : vector<2x64xf32> to vector<2x64xbf16>
    %cst_17 = arith.constant dense<0.000000e+00> : vector<2x256xf32>
    %128 = tpu.matmul %127, %8, %cst_17 {dimension_numbers = #tpu.dot_dimension_numbers<[1], [0], [0], [1], [0, 0, 1, 1], [], []>} : vector<2x64xbf16>, vector<64x256xbf16>, vector<2x256xf32> -> vector<2x256xf32>
    %129 = arith.addf %126, %128 : vector<2x256xf32>
    %130 = arith.negf %129 : vector<2x256xf32>
    %131 = math.exp %130 : vector<2x256xf32>
    %cst_18 = arith.constant 1.000000e+00 : f32
    %132 = vector.broadcast %cst_18 : f32 to vector<2x256xf32>
    %133 = arith.addf %132, %131 : vector<2x256xf32>
    %134 = arith.divf %132, %133 : vector<2x256xf32>
    %135 = math.tanh %129 : vector<2x256xf32>
    %136 = vector.extract_strided_slice %134 {offsets = [0, 0], sizes = [2, 64], strides = [1, 1]} : vector<2x256xf32> to vector<2x64xf32>
    %137 = vector.extract_strided_slice %134 {offsets = [0, 64], sizes = [2, 64], strides = [1, 1]} : vector<2x256xf32> to vector<2x64xf32>
    %138 = vector.extract_strided_slice %135 {offsets = [0, 128], sizes = [2, 64], strides = [1, 1]} : vector<2x256xf32> to vector<2x64xf32>
    %139 = vector.extract_strided_slice %134 {offsets = [0, 192], sizes = [2, 64], strides = [1, 1]} : vector<2x256xf32> to vector<2x64xf32>
    %140 = arith.mulf %137, %118 : vector<2x64xf32>
    %141 = arith.mulf %136, %138 : vector<2x64xf32>
    %142 = arith.addf %140, %141 : vector<2x64xf32>
    %143 = math.tanh %142 : vector<2x64xf32>
    %144 = arith.mulf %139, %143 : vector<2x64xf32>
    %145 = arith.maximumf %121, %144 : vector<2x64xf32>
    %146 = vector.extract_strided_slice %7 {offsets = [0, 6, 0], sizes = [2, 1, 256], strides = [1, 1, 1]} : vector<2x8x512xf32> to vector<2x1x256xf32>
    %147 = vector.shape_cast %146 : vector<2x1x256xf32> to vector<2x256xf32>
    %148 = vector.extract_strided_slice %7 {offsets = [0, 1, 256], sizes = [2, 1, 256], strides = [1, 1, 1]} : vector<2x8x512xf32> to vector<2x1x256xf32>
    %149 = vector.shape_cast %148 : vector<2x1x256xf32> to vector<2x256xf32>
    %150 = arith.addf %147, %149 : vector<2x256xf32>
    %151 = arith.truncf %144 : vector<2x64xf32> to vector<2x64xbf16>
    %cst_19 = arith.constant dense<0.000000e+00> : vector<2x256xf32>
    %152 = tpu.matmul %151, %8, %cst_19 {dimension_numbers = #tpu.dot_dimension_numbers<[1], [0], [0], [1], [0, 0, 1, 1], [], []>} : vector<2x64xbf16>, vector<64x256xbf16>, vector<2x256xf32> -> vector<2x256xf32>
    %153 = arith.addf %150, %152 : vector<2x256xf32>
    %154 = arith.negf %153 : vector<2x256xf32>
    %155 = math.exp %154 : vector<2x256xf32>
    %cst_20 = arith.constant 1.000000e+00 : f32
    %156 = vector.broadcast %cst_20 : f32 to vector<2x256xf32>
    %157 = arith.addf %156, %155 : vector<2x256xf32>
    %158 = arith.divf %156, %157 : vector<2x256xf32>
    %159 = math.tanh %153 : vector<2x256xf32>
    %160 = vector.extract_strided_slice %158 {offsets = [0, 0], sizes = [2, 64], strides = [1, 1]} : vector<2x256xf32> to vector<2x64xf32>
    %161 = vector.extract_strided_slice %158 {offsets = [0, 64], sizes = [2, 64], strides = [1, 1]} : vector<2x256xf32> to vector<2x64xf32>
    %162 = vector.extract_strided_slice %159 {offsets = [0, 128], sizes = [2, 64], strides = [1, 1]} : vector<2x256xf32> to vector<2x64xf32>
    %163 = vector.extract_strided_slice %158 {offsets = [0, 192], sizes = [2, 64], strides = [1, 1]} : vector<2x256xf32> to vector<2x64xf32>
    %164 = arith.mulf %161, %142 : vector<2x64xf32>
    %165 = arith.mulf %160, %162 : vector<2x64xf32>
    %166 = arith.addf %164, %165 : vector<2x64xf32>
    %167 = math.tanh %166 : vector<2x64xf32>
    %168 = arith.mulf %163, %167 : vector<2x64xf32>
    %169 = arith.maximumf %145, %168 : vector<2x64xf32>
    %170 = vector.extract_strided_slice %7 {offsets = [0, 7, 0], sizes = [2, 1, 256], strides = [1, 1, 1]} : vector<2x8x512xf32> to vector<2x1x256xf32>
    %171 = vector.shape_cast %170 : vector<2x1x256xf32> to vector<2x256xf32>
    %172 = vector.extract_strided_slice %7 {offsets = [0, 0, 256], sizes = [2, 1, 256], strides = [1, 1, 1]} : vector<2x8x512xf32> to vector<2x1x256xf32>
    %173 = vector.shape_cast %172 : vector<2x1x256xf32> to vector<2x256xf32>
    %174 = arith.addf %171, %173 : vector<2x256xf32>
    %175 = arith.truncf %168 : vector<2x64xf32> to vector<2x64xbf16>
    %cst_21 = arith.constant dense<0.000000e+00> : vector<2x256xf32>
    %176 = tpu.matmul %175, %8, %cst_21 {dimension_numbers = #tpu.dot_dimension_numbers<[1], [0], [0], [1], [0, 0, 1, 1], [], []>} : vector<2x64xbf16>, vector<64x256xbf16>, vector<2x256xf32> -> vector<2x256xf32>
    %177 = arith.addf %174, %176 : vector<2x256xf32>
    %178 = arith.negf %177 : vector<2x256xf32>
    %179 = math.exp %178 : vector<2x256xf32>
    %cst_22 = arith.constant 1.000000e+00 : f32
    %180 = vector.broadcast %cst_22 : f32 to vector<2x256xf32>
    %181 = arith.addf %180, %179 : vector<2x256xf32>
    %182 = arith.divf %180, %181 : vector<2x256xf32>
    %183 = math.tanh %177 : vector<2x256xf32>
    %184 = vector.extract_strided_slice %182 {offsets = [0, 0], sizes = [2, 64], strides = [1, 1]} : vector<2x256xf32> to vector<2x64xf32>
    %185 = vector.extract_strided_slice %182 {offsets = [0, 64], sizes = [2, 64], strides = [1, 1]} : vector<2x256xf32> to vector<2x64xf32>
    %186 = vector.extract_strided_slice %183 {offsets = [0, 128], sizes = [2, 64], strides = [1, 1]} : vector<2x256xf32> to vector<2x64xf32>
    %187 = vector.extract_strided_slice %182 {offsets = [0, 192], sizes = [2, 64], strides = [1, 1]} : vector<2x256xf32> to vector<2x64xf32>
    %188 = arith.mulf %185, %166 : vector<2x64xf32>
    %189 = arith.mulf %184, %186 : vector<2x64xf32>
    %190 = arith.addf %188, %189 : vector<2x64xf32>
    %191 = math.tanh %190 : vector<2x64xf32>
    %192 = arith.mulf %187, %191 : vector<2x64xf32>
    %193 = arith.maximumf %169, %192 : vector<2x64xf32>
    %cst_23 = arith.constant 0.000000e+00 : bf16
    %194 = vector.broadcast %cst_23 : bf16 to vector<2x4x32xbf16>
    %195 = tpu.concatenate %0, %194 in 1 : vector<2x8x32xbf16>, vector<2x4x32xbf16> -> vector<2x12x32xbf16>
    %196 = vector.extract_strided_slice %195 {offsets = [0, 0, 0], sizes = [2, 8, 32], strides = [1, 1, 1]} : vector<2x12x32xbf16> to vector<2x8x32xbf16>
    %197 = vector.shape_cast %196 : vector<2x8x32xbf16> to vector<16x32xbf16>
    %c0_24 = arith.constant 0 : index
    %c0_25 = arith.constant 0 : index
    %c0_26 = arith.constant 0 : index
    %198 = vector.load %arg4[%c0_24, %c0_25, %c0_26] : memref<5x32x64xbf16, #tpu.memory_space<vmem>>, vector<1x32x64xbf16>
    %199 = vector.shape_cast %198 : vector<1x32x64xbf16> to vector<32x64xbf16>
    %cst_27 = arith.constant dense<0.000000e+00> : vector<16x64xf32>
    %200 = tpu.matmul %197, %199, %cst_27 {dimension_numbers = #tpu.dot_dimension_numbers<[1], [0], [0], [1], [0, 0, 1, 1], [], []>} : vector<16x32xbf16>, vector<32x64xbf16>, vector<16x64xf32> -> vector<16x64xf32>
    %201 = vector.extract_strided_slice %195 {offsets = [0, 1, 0], sizes = [2, 8, 32], strides = [1, 1, 1]} : vector<2x12x32xbf16> to vector<2x8x32xbf16>
    %202 = vector.shape_cast %201 : vector<2x8x32xbf16> to vector<16x32xbf16>
    %c1 = arith.constant 1 : index
    %c0_28 = arith.constant 0 : index
    %c0_29 = arith.constant 0 : index
    %203 = vector.load %arg4[%c1, %c0_28, %c0_29] : memref<5x32x64xbf16, #tpu.memory_space<vmem>>, vector<1x32x64xbf16>
    %204 = vector.shape_cast %203 : vector<1x32x64xbf16> to vector<32x64xbf16>
    %cst_30 = arith.constant dense<0.000000e+00> : vector<16x64xf32>
    %205 = tpu.matmul %202, %204, %cst_30 {dimension_numbers = #tpu.dot_dimension_numbers<[1], [0], [0], [1], [0, 0, 1, 1], [], []>} : vector<16x32xbf16>, vector<32x64xbf16>, vector<16x64xf32> -> vector<16x64xf32>
    %206 = arith.addf %200, %205 : vector<16x64xf32>
    %207 = vector.extract_strided_slice %195 {offsets = [0, 2, 0], sizes = [2, 8, 32], strides = [1, 1, 1]} : vector<2x12x32xbf16> to vector<2x8x32xbf16>
    %208 = vector.shape_cast %207 : vector<2x8x32xbf16> to vector<16x32xbf16>
    %c2 = arith.constant 2 : index
    %c0_31 = arith.constant 0 : index
    %c0_32 = arith.constant 0 : index
    %209 = vector.load %arg4[%c2, %c0_31, %c0_32] : memref<5x32x64xbf16, #tpu.memory_space<vmem>>, vector<1x32x64xbf16>
    %210 = vector.shape_cast %209 : vector<1x32x64xbf16> to vector<32x64xbf16>
    %cst_33 = arith.constant dense<0.000000e+00> : vector<16x64xf32>
    %211 = tpu.matmul %208, %210, %cst_33 {dimension_numbers = #tpu.dot_dimension_numbers<[1], [0], [0], [1], [0, 0, 1, 1], [], []>} : vector<16x32xbf16>, vector<32x64xbf16>, vector<16x64xf32> -> vector<16x64xf32>
    %212 = arith.addf %206, %211 : vector<16x64xf32>
    %213 = vector.extract_strided_slice %195 {offsets = [0, 3, 0], sizes = [2, 8, 32], strides = [1, 1, 1]} : vector<2x12x32xbf16> to vector<2x8x32xbf16>
    %214 = vector.shape_cast %213 : vector<2x8x32xbf16> to vector<16x32xbf16>
    %c3 = arith.constant 3 : index
    %c0_34 = arith.constant 0 : index
    %c0_35 = arith.constant 0 : index
    %215 = vector.load %arg4[%c3, %c0_34, %c0_35] : memref<5x32x64xbf16, #tpu.memory_space<vmem>>, vector<1x32x64xbf16>
    %216 = vector.shape_cast %215 : vector<1x32x64xbf16> to vector<32x64xbf16>
    %cst_36 = arith.constant dense<0.000000e+00> : vector<16x64xf32>
    %217 = tpu.matmul %214, %216, %cst_36 {dimension_numbers = #tpu.dot_dimension_numbers<[1], [0], [0], [1], [0, 0, 1, 1], [], []>} : vector<16x32xbf16>, vector<32x64xbf16>, vector<16x64xf32> -> vector<16x64xf32>
    %218 = arith.addf %212, %217 : vector<16x64xf32>
    %219 = vector.extract_strided_slice %195 {offsets = [0, 4, 0], sizes = [2, 8, 32], strides = [1, 1, 1]} : vector<2x12x32xbf16> to vector<2x8x32xbf16>
    %220 = vector.shape_cast %219 : vector<2x8x32xbf16> to vector<16x32xbf16>
    %c4 = arith.constant 4 : index
    %c0_37 = arith.constant 0 : index
    %c0_38 = arith.constant 0 : index
    %221 = vector.load %arg4[%c4, %c0_37, %c0_38] : memref<5x32x64xbf16, #tpu.memory_space<vmem>>, vector<1x32x64xbf16>
    %222 = vector.shape_cast %221 : vector<1x32x64xbf16> to vector<32x64xbf16>
    %cst_39 = arith.constant dense<0.000000e+00> : vector<16x64xf32>
    %223 = tpu.matmul %220, %222, %cst_39 {dimension_numbers = #tpu.dot_dimension_numbers<[1], [0], [0], [1], [0, 0, 1, 1], [], []>} : vector<16x32xbf16>, vector<32x64xbf16>, vector<16x64xf32> -> vector<16x64xf32>
    %224 = arith.addf %218, %223 : vector<16x64xf32>
    %225 = vector.shape_cast %224 : vector<16x64xf32> to vector<2x8x64xf32>
    %c0_40 = arith.constant 0 : index
    %c0_41 = arith.constant 0 : index
    %226 = vector.load %arg5[%c0_40, %c0_41] : memref<1x64xf32, #tpu.memory_space<vmem>>, vector<1x64xf32>
    %227 = vector.shape_cast %226 : vector<1x64xf32> to vector<1x1x64xf32>
    %228 = vector.broadcast %227 : vector<1x1x64xf32> to vector<2x8x64xf32>
    %229 = arith.addf %225, %228 : vector<2x8x64xf32>
    %cst_42 = arith.constant 0.000000e+00 : f32
    %230 = vector.broadcast %cst_42 : f32 to vector<2x8x64xf32>
    %231 = arith.maximumf %229, %230 : vector<2x8x64xf32>
    %232 = tpu.iota {dimensions = array<i32: 1>} : vector<1x8x64xi32>
    %c0_43 = arith.constant 0 : index
    %c0_44 = arith.constant 0 : index
    %233 = vector.load %arg6[%c0_43, %c0_44] : memref<1x64xi32, #tpu.memory_space<vmem>>, vector<1x64xi32>
    %234 = vector.shape_cast %233 : vector<1x64xi32> to vector<1x1x64xi32>
    %235 = vector.broadcast %234 : vector<1x1x64xi32> to vector<1x8x64xi32>
    %236 = arith.cmpi slt, %232, %235 : vector<1x8x64xi32>
    %cst_45 = arith.constant 0.000000e+00 : f32
    %237 = vector.shape_cast %236 : vector<1x8x64xi1> to vector<1x8x64xi1>
    %238 = vector.broadcast %237 : vector<1x8x64xi1> to vector<2x8x64xi1>
    %239 = vector.broadcast %cst_45 : f32 to vector<2x8x64xf32>
    %240 = arith.select %238, %231, %239 : vector<2x8x64xi1>, vector<2x8x64xf32>
    %cst_46 = arith.constant dense<0xFF800000> : vector<2x64xf32>
    %241 = vector.multi_reduction <maximumf>, %240, %cst_46 [1] : vector<2x8x64xf32> to vector<2x64xf32>
    %242 = tpu.concatenate %193, %241 in 1 : vector<2x64xf32>, vector<2x64xf32> -> vector<2x128xf32>
    %243 = arith.truncf %242 : vector<2x128xf32> to vector<2x128xbf16>
    %c0_47 = arith.constant 0 : index
    %c0_48 = arith.constant 0 : index
    %244 = vector.load %arg7[%c0_47, %c0_48] : memref<128x5xbf16, #tpu.memory_space<vmem>>, vector<128x5xbf16>
    %cst_49 = arith.constant dense<0.000000e+00> : vector<2x5xf32>
    %245 = tpu.matmul %243, %244, %cst_49 {dimension_numbers = #tpu.dot_dimension_numbers<[1], [0], [0], [1], [0, 0, 1, 1], [], []>} : vector<2x128xbf16>, vector<128x5xbf16>, vector<2x5xf32> -> vector<2x5xf32>
    %c0_50 = arith.constant 0 : index
    %c0_51 = arith.constant 0 : index
    %246 = vector.load %arg8[%c0_50, %c0_51] : memref<1x5xf32, #tpu.memory_space<vmem>>, vector<1x5xf32>
    %247 = vector.broadcast %246 : vector<1x5xf32> to vector<2x5xf32>
    %248 = arith.addf %245, %247 : vector<2x5xf32>
    %c0_52 = arith.constant 0 : index
    %c0_53 = arith.constant 0 : index
    %249 = vector.load %arg9[%c0_52, %c0_53] : memref<2x5xf32, #tpu.memory_space<vmem>>, vector<2x5xf32>
    tpu.vector_store %arg9[%c0_52, %c0_53], %248 {strides = array<i32>} : memref<2x5xf32, #tpu.memory_space<vmem>>, vector<2x5xf32>,
    return
  }
}

</mosaic_0001>

<llo_original>
// kernel: cnn_lstm_forward.1
$region0: #{cnn_lstm_forward.1}
  #allocation0 [shape = 'u32[]', space=smem, size = 0x4, offset = 0x4, fixed_abs, tag = 'smem constant byte address 0x4 - core index']
  #allocation1 [shape = 'u32[144,128]{1,0:T(1,128)}', space=vmem, size = 0x12000, scoped, tag = 'internal scratch']
  %s0 = inlined_call_operand.vmem [shape: bf16[2,8,32], index: 0, kind: input, shape index: {}]
  %s1 = inlined_call_operand.vmem [shape: bf16[32,512], index: 1, kind: input, shape index: {}]
  %s2 = inlined_call_operand.vmem [shape: f32[1,512], index: 2, kind: input, shape index: {}]
  %s3 = inlined_call_operand.hbm [shape: bf16[64,256], index: 3, kind: input, shape index: {}]
  %s4 = inlined_call_operand.vmem [shape: bf16[5,32,64], index: 4, kind: input, shape index: {}]
  %s5 = inlined_call_operand.vmem [shape: f32[1,64], index: 5, kind: input, shape index: {}]
  %s6 = inlined_call_operand.vmem [shape: s32[1,64], index: 6, kind: input, shape index: {}]
  %s7 = inlined_call_operand.vmem [shape: bf16[128,5], index: 7, kind: input, shape index: {}]
  %s8 = inlined_call_operand.vmem [shape: f32[1,5], index: 8, kind: input, shape index: {}]
  %s9 = inlined_call_operand.hbm [shape: f32[2,5], index: 9, kind: output, shape index: {}]
  %s10 = sld [smem:[#allocation0]]
  $region50: #{cnn_lstm_forward.1} parent=0
    _
  %s12 = ssub.s32 1, %s10
  %s13 = scalar_select 0, %s12, %s10
  $region1: #{cnn_lstm_forward.1} parent=0
    #allocation2 [shape = 'u8[32768]{0}', space=vmem, size = 0x8000, scoped, tag = 'input window, operand 3, single buffered']
    #allocation3 [shape = 's32[1]{0}', space=sflag, size = 0x4, scoped, tag = 'scoped memory for cnn_lstm_forward.1']
    #allocation4 [shape = 's32[1]{0}', space=sflag, size = 0x4, scoped, tag = 'scoped memory for cnn_lstm_forward.1']
    #allocation5 [shape = 'u8[1024]{0}', space=vmem, size = 0x400, scoped, tag = 'output window, operand 0, single buffered']
    %14 = vsyncpa [#allocation3], 0
    %15 = vsyncpa [#allocation4], 0
    // Predicated region
    $region2: #{cnn_lstm_forward.1} parent=1 // pred_check
      _
    $region3: #{cnn_lstm_forward.1} parent=1 // pred_check_branch
      %17 = sbr.rel (0) target = $region5
    $region4: #{cnn_lstm_forward.1} parent=1 // pred_region
      _
    $region5: #{cnn_lstm_forward.1} parent=1 // pred_fallthru
      _
    // Predicated region
    $region6: #{cnn_lstm_forward.1} parent=1 // pred_check
      _
    $region7: #{cnn_lstm_forward.1} parent=1 // pred_check_branch
      %19 = sbr.rel (0) target = $region9
    $region8: #{cnn_lstm_forward.1} parent=1 // pred_region
      _
    $region9: #{cnn_lstm_forward.1} parent=1 // pred_fallthru
      _
    // Predicated region
    $region10: #{cnn_lstm_forward.1} parent=1 // pred_check
      _
    $region11: #{cnn_lstm_forward.1} parent=1 // pred_check_branch
      %21 = sbr.rel (0) target = $region13
    $region12: #{cnn_lstm_forward.1} parent=1 // pred_region
      _
    $region13: #{cnn_lstm_forward.1} parent=1 // pred_fallthru
      _
    // Predicated region
    $region14: #{cnn_lstm_forward.1} parent=1 // pred_check
      _
    $region15: #{cnn_lstm_forward.1} parent=1 // pred_check_branch
      %23 = sbr.rel (0) target = $region17
    $region16: #{cnn_lstm_forward.1} parent=1 // pred_region
      %s25 = ssub.s32 1024, 1024
      %26 = vsyncadd [#allocation3], %s25
      %s27 = sshll.u32 [#allocation2], 4
      %s28 = int_to_ptr.vmem [resolvable:$true] %s27
      %33 = dma.hbm_to_vmem [thread:$0]  %s3, 1024, %s28, [#allocation3], 128, 128, 8
    $region17: #{cnn_lstm_forward.1} parent=1 // pred_fallthru
      _
    // Predicated region
    $region18: #{cnn_lstm_forward.1} parent=1 // pred_check
      _
    $region19: #{cnn_lstm_forward.1} parent=1 // pred_check_branch
      %35 = sbr.rel (0) target = $region21
    $region20: #{cnn_lstm_forward.1} parent=1 // pred_region
      _
    $region21: #{cnn_lstm_forward.1} parent=1 // pred_fallthru
      _
    // Predicated region
    $region22: #{cnn_lstm_forward.1} parent=1 // pred_check
      _
    $region23: #{cnn_lstm_forward.1} parent=1 // pred_check_branch
      %37 = sbr.rel (0) target = $region25
    $region24: #{cnn_lstm_forward.1} parent=1 // pred_region
      _
    $region25: #{cnn_lstm_forward.1} parent=1 // pred_fallthru
      _
    // Predicated region
    $region26: #{cnn_lstm_forward.1} parent=1 // pred_check
      _
    $region27: #{cnn_lstm_forward.1} parent=1 // pred_check_branch
      %39 = sbr.rel (0) target = $region29
    $region28: #{cnn_lstm_forward.1} parent=1 // pred_region
      _
    $region29: #{cnn_lstm_forward.1} parent=1 // pred_fallthru
      _
    // Predicated region
    $region30: #{cnn_lstm_forward.1} parent=1 // pred_check
      _
    $region31: #{cnn_lstm_forward.1} parent=1 // pred_check_branch
      %41 = sbr.rel (0) target = $region33
    $region32: #{cnn_lstm_forward.1} parent=1 // pred_region
      _
    $region33: #{cnn_lstm_forward.1} parent=1 // pred_fallthru
      _
    // Predicated region
    $region34: #{cnn_lstm_forward.1} parent=1 // pred_check
      _
    $region35: #{cnn_lstm_forward.1} parent=1 // pred_check_branch
      %43 = sbr.rel (0) target = $region37
    $region36: #{cnn_lstm_forward.1} parent=1 // pred_region
      _
    $region37: #{cnn_lstm_forward.1} parent=1 // pred_fallthru
      _
    // Predicated region
    $region38: #{cnn_lstm_forward.1} parent=1 // pred_check
      _
    $region39: #{cnn_lstm_forward.1} parent=1 // pred_check_branch
      %45 = sbr.rel (0) target = $region41
    $region40: #{cnn_lstm_forward.1} parent=1 // pred_region
      %46 = dma.done [#allocation3], 1024
    $region41: #{cnn_lstm_forward.1} parent=1 // pred_fallthru
      _
    %v48 = vld [vmem:[%s0] sm:$0xf]
    %v49 = vld [vmem:[%s0 + $0x4] sm:$0xf]
    %v50 = vld [vmem:[%s1] sm:$0xff]
    %v51 = vld [vmem:[%s1 + $0x8] sm:$0xff]
    %v52 = vld [vmem:[%s1 + $0x10] sm:$0xff]
    %v53 = vld [vmem:[%s1 + $0x18] sm:$0xff]
    %v54 = vld [vmem:[%s1 + $0x20] sm:$0xff]
    %v55 = vld [vmem:[%s1 + $0x28] sm:$0xff]
    %v56 = vld [vmem:[%s1 + $0x30] sm:$0xff]
    %v57 = vld [vmem:[%s1 + $0x38] sm:$0xff]
    %v58 = vld [vmem:[%s2] sm:$0xf]
    %v60 = vlaneseq
    %v61 = vshrl.u32 %v60, 7
    %v62 = vsub.s32 0, %v61
    %v63 = vrot.slane %v58, %v62
    %v64 = vlaneseq
    %v65 = vshrl.u32 %v64, 7
    %v66 = vsub.s32 1, %v65
    %v67 = vrot.slane %v58, %v66
    %v68 = vlaneseq
    %v69 = vshrl.u32 %v68, 7
    %v70 = vsub.s32 2, %v69
    %v71 = vrot.slane %v58, %v70
    %v72 = vlaneseq
    %v73 = vshrl.u32 %v72, 7
    %v74 = vsub.s32 3, %v73
    %v75 = vrot.slane %v58, %v74
    %v82 = vunpack.c.l.b16 %v48
    %v83 = vunpack.c.l.b16 %v49
    %v84 = vpack.c.b16 %v83, %v82
    %v93 = vunpack.c.l.b16 %v50
    %v94 = vunpack.c.h.b16 %v50
    %v95 = vunpack.c.l.b16 %v51
    %v96 = vunpack.c.h.b16 %v51
    %v97 = vunpack.c.l.b16 %v52
    %v98 = vunpack.c.h.b16 %v52
    %v99 = vunpack.c.l.b16 %v53
    %v100 = vunpack.c.h.b16 %v53
    %v101 = vunpack.c.l.b16 %v54
    %v102 = vunpack.c.h.b16 %v54
    %v103 = vunpack.c.l.b16 %v55
    %v104 = vunpack.c.h.b16 %v55
    %v105 = vunpack.c.l.b16 %v56
    %v106 = vunpack.c.h.b16 %v56
    %v107 = vunpack.c.l.b16 %v57
    %v108 = vunpack.c.h.b16 %v57
    %v109 = vpack.c.b16 %v97, %v93
    %v110 = vpack.c.b16 %v98, %v94
    %v111 = vpack.c.b16 %v99, %v95
    %v112 = vpack.c.b16 %v100, %v96
    %v113 = vpack.c.b16 %v105, %v101
    %v114 = vpack.c.b16 %v106, %v102
    %v115 = vpack.c.b16 %v107, %v103
    %v116 = vpack.c.b16 %v108, %v104
    %vm125 = vcmask 261120
    %v127 = vsel %vm125, %v84, 0
    %129 = vmatprep.subr.bf16.mxu0 0
    %130 = vmatpush1.bf16.msra.mxu0 0
    %131 = vmatprep.subr.bf16.mxu0 0
    %132 = vmatpush1.bf16.msra.mxu0 0
    %133 = vmatprep.subr.bf16.mxu0 0
    %134 = vmatpush1.bf16.msra.mxu0 0
    %135 = vmatprep.subr.bf16.mxu0 0
    %136 = vmatpush1.bf16.msra.mxu0 0
    %137 = vmatprep.subr.bf16.mxu0 0
    %138 = vmatpush1.bf16.msra.mxu0 0
    %139 = vmatprep.subr.bf16.mxu0 0
    %140 = vmatpush1.bf16.msra.mxu0 0
    %141 = vmatprep.subr.bf16.mxu0 %v114
    %142 = vmatpush1.bf16.msra.mxu0 %v113
    %143 = vmatprep.subr.bf16.mxu0 %v110
    %144 = vmatpush1.bf16.msra.mxu0 %v109
    %145 = vmatprep.subr.bf16.mxu0 0
    %146 = vmatpush2.bf16.msra.mxu0 0
    %147 = vmatprep.subr.bf16.mxu0 0
    %148 = vmatpush2.bf16.msra.mxu0 0
    %149 = vmatprep.subr.bf16.mxu0 0
    %150 = vmatpush2.bf16.msra.mxu0 0
    %151 = vmatprep.subr.bf16.mxu0 0
    %152 = vmatpush2.bf16.msra.mxu0 0
    %153 = vmatprep.subr.bf16.mxu0 0
    %154 = vmatpush2.bf16.msra.mxu0 0
    %155 = vmatprep.subr.bf16.mxu0 0
    %156 = vmatpush2.bf16.msra.mxu0 0
    %157 = vmatprep.subr.bf16.mxu0 0
    %158 = vmatpush2.bf16.msra.mxu0 0
    %159 = vmatprep.subr.bf16.mxu0 0
    %160 = vmatpush2.bf16.msra.mxu0 0
    %161 = vmatprep.mubr.bf16.mxu0 0
    %162 = vmatmul.mubr.bf16.gmra.mxu0 %v127
    %v163 = vpop.f32.mrf.mxu0
    %v164 = vadd.f32 %v63, %v163
    %v165 = vpop.f32.mrf.mxu0
    %v166 = vadd.f32 %v67, %v165
    %v167 = vpop.f32.mrf.mxu0
    %v168 = vadd.f32 %v63, %v167
    %v169 = vpop.f32.mrf.mxu0
    %v170 = vadd.f32 %v67, %v169
    %171 = vdwg.mxu0
    %172 = vmatprep.subr.bf16.mxu0 0
    %173 = vmatpush1.bf16.msra.mxu0 0
    %174 = vmatprep.subr.bf16.mxu0 0
    %175 = vmatpush1.bf16.msra.mxu0 0
    %176 = vmatprep.subr.bf16.mxu0 0
    %177 = vmatpush1.bf16.msra.mxu0 0
    %178 = vmatprep.subr.bf16.mxu0 0
    %179 = vmatpush1.bf16.msra.mxu0 0
    %180 = vmatprep.subr.bf16.mxu0 0
    %181 = vmatpush1.bf16.msra.mxu0 0
    %182 = vmatprep.subr.bf16.mxu0 0
    %183 = vmatpush1.bf16.msra.mxu0 0
    %184 = vmatprep.subr.bf16.mxu0 %v116
    %185 = vmatpush1.bf16.msra.mxu0 %v115
    %186 = vmatprep.subr.bf16.mxu0 %v112
    %187 = vmatpush1.bf16.msra.mxu0 %v111
    %188 = vmatprep.subr.bf16.mxu0 0
    %189 = vmatpush2.bf16.msra.mxu0 0
    %190 = vmatprep.subr.bf16.mxu0 0
    %191 = vmatpush2.bf16.msra.mxu0 0
    %192 = vmatprep.subr.bf16.mxu0 0
    %193 = vmatpush2.bf16.msra.mxu0 0
    %194 = vmatprep.subr.bf16.mxu0 0
    %195 = vmatpush2.bf16.msra.mxu0 0
    %196 = vmatprep.subr.bf16.mxu0 0
    %197 = vmatpush2.bf16.msra.mxu0 0
    %198 = vmatprep.subr.bf16.mxu0 0
    %199 = vmatpush2.bf16.msra.mxu0 0
    %200 = vmatprep.subr.bf16.mxu0 0
    %201 = vmatpush2.bf16.msra.mxu0 0
    %202 = vmatprep.subr.bf16.mxu0 0
    %203 = vmatpush2.bf16.msra.mxu0 0
    %204 = vmatprep.mubr.bf16.mxu0 0
    %205 = vmatmul.mubr.bf16.gmra.mxu0 %v127
    %v206 = vpop.f32.mrf.mxu0
    %v207 = vadd.f32 %v71, %v206
    %v208 = vpop.f32.mrf.mxu0
    %v209 = vadd.f32 %v75, %v208
    %v210 = vpop.f32.mrf.mxu0
    %v211 = vadd.f32 %v71, %v210
    %v212 = vpop.f32.mrf.mxu0
    %v213 = vadd.f32 %v75, %v212
    %214 = vdwg.mxu0
    %v215 = vld [vmem:[#allocation2] sm:$0xff]
    %v216 = vld [vmem:[#allocation2 + $0x8] sm:$0xff]
    %v217 = vld [vmem:[#allocation2 + $0x10] sm:$0xff]
    %v218 = vld [vmem:[#allocation2 + $0x18] sm:$0xff]
    %v219 = vld [vmem:[#allocation2 + $0x20] sm:$0xff]
    %v220 = vld [vmem:[#allocation2 + $0x28] sm:$0xff]
    %v221 = vld [vmem:[#allocation2 + $0x30] sm:$0xff]
    %v222 = vld [vmem:[#allocation2 + $0x38] sm:$0xff]
    %v227 = vrot.slane %v207, 7
    %v228 = vrot.slane %v209, 7
    %v229 = vrot.slane %v211, 7
    %v230 = vrot.slane %v213, 7
    %v235 = vadd.f32 %v164, %v227
    %v236 = vadd.f32 %v166, %v228
    %v237 = vadd.f32 %v168, %v229
    %v238 = vadd.f32 %v170, %v230
    %v239 = vxor.u32 %v235, 2147483648
    %v240 = vxor.u32 %v236, 2147483648
    %v241 = vxor.u32 %v237, 2147483648
    %v242 = vxor.u32 %v238, 2147483648
    %v243 = vmul.f32 %v239, 1.442695
    %v244 = vpow.pop %v243
    %v245 = vmul.f32 %v240, 1.442695
    %v246 = vpow.pop %v245
    %v247 = vmul.f32 %v241, 1.442695
    %v248 = vpow.pop %v247
    %v249 = vmul.f32 %v242, 1.442695
    %v250 = vpow.pop %v249
    %v251 = vadd.f32 %v244, 1.0
    %v252 = vadd.f32 %v246, 1.0
    %v253 = vadd.f32 %v248, 1.0
    %v254 = vadd.f32 %v250, 1.0
    %v255 = vrcp.pop %v251
    %v256 = vmul.f32 1.0, %v255
    %v257 = vrcp.pop %v252
    %v258 = vmul.f32 1.0, %v257
    %v259 = vrcp.pop %v253
    %v260 = vmul.f32 1.0, %v259
    %v261 = vrcp.pop %v254
    %v262 = vmul.f32 1.0, %v261
    %v263 = vtanh.pop %v236
    %v264 = vtanh.pop %v238
    %v265 = vmul.f32 %v256, %v263
    %v266 = vmul.f32 %v260, %v264
    %v267 = vtanh.pop %v265
    %v268 = vtanh.pop %v266
    %271 = vrot.lane.b32.xlu0 %v267, 64
    %v272 = vpop.permute.xlu0 %271
    %273 = vrot.lane.b32.xlu0 %v268, 64
    %v274 = vpop.permute.xlu0 %273
    %v277 = vmul.f32 %v258, %v272
    %v278 = vmul.f32 %v262, %v274
    %v279 = vrot.slane %v207, 5
    %v280 = vrot.slane %v209, 5
    %v281 = vrot.slane %v211, 5
    %v282 = vrot.slane %v213, 5
    %v287 = vadd.f32 %v164, %v279
    %v288 = vadd.f32 %v166, %v280
    %v289 = vadd.f32 %v168, %v281
    %v290 = vadd.f32 %v170, %v282
    %v291 = vpack.c.bf16 %v277, %v277
    %v292 = vpack.c.bf16 %v278, %v278
    %v295 = vunpack.c.l.b16 %v291
    %v296 = vunpack.c.l.b16 %v292
    %v297 = vrot.slane %v296, 7
    %vm298 = vcmask 1041409
    %v299 = vsel %vm298, %v297, %v295
    %v300 = vpack.c.b16 %v299, %v299
    %301 = vrot.lane.b32.xlu0 %v300, 64
    %v302 = vpop.permute.xlu0 %301
    %v311 = vunpack.c.l.b16 %v215
    %v312 = vunpack.c.h.b16 %v215
    %v313 = vunpack.c.l.b16 %v216
    %v314 = vunpack.c.h.b16 %v216
    %v315 = vunpack.c.l.b16 %v217
    %v316 = vunpack.c.h.b16 %v217
    %v317 = vunpack.c.l.b16 %v218
    %v318 = vunpack.c.h.b16 %v218
    %v319 = vunpack.c.l.b16 %v219
    %v320 = vunpack.c.h.b16 %v219
    %v321 = vunpack.c.l.b16 %v220
    %v322 = vunpack.c.h.b16 %v220
    %v323 = vunpack.c.l.b16 %v221
    %v324 = vunpack.c.h.b16 %v221
    %v325 = vunpack.c.l.b16 %v222
    %v326 = vunpack.c.h.b16 %v222
    %v327 = vpack.c.b16 %v313, %v311
    %v328 = vpack.c.b16 %v314, %v312
    %v329 = vpack.c.b16 %v317, %v315
    %v330 = vpack.c.b16 %v318, %v316
    %v331 = vpack.c.b16 %v321, %v319
    %v332 = vpack.c.b16 %v322, %v320
    %v333 = vpack.c.b16 %v325, %v323
    %v334 = vpack.c.b16 %v326, %v324
    %vm343 = vcmask 523264
    %v345 = vsel %vm343, %v302, 0
    %347 = vmatprep.subr.bf16.mxu0 0
    %348 = vmatpush1.bf16.msra.mxu0 0
    %349 = vmatprep.subr.bf16.mxu0 0
    %350 = vmatpush1.bf16.msra.mxu0 0
    %351 = vmatprep.subr.bf16.mxu0 0
    %352 = vmatpush1.bf16.msra.mxu0 0
    %353 = vmatprep.subr.bf16.mxu0 0
    %354 = vmatpush1.bf16.msra.mxu0 0
    %355 = vmatprep.subr.bf16.mxu0 %v334
    %356 = vmatpush1.bf16.msra.mxu0 %v333
    %357 = vmatprep.subr.bf16.mxu0 %v332
    %358 = vmatpush1.bf16.msra.mxu0 %v331
    %359 = vmatprep.subr.bf16.mxu0 %v330
    %360 = vmatpush1.bf16.msra.mxu0 %v329
    %361 = vmatprep.subr.bf16.mxu0 %v328
    %362 = vmatpush1.bf16.msra.mxu0 %v327
    %363 = vmatprep.subr.bf16.mxu0 0
    %364 = vmatpush2.bf16.msra.mxu0 0
    %365 = vmatprep.subr.bf16.mxu0 0
    %366 = vmatpush2.bf16.msra.mxu0 0
    %367 = vmatprep.subr.bf16.mxu0 0
    %368 = vmatpush2.bf16.msra.mxu0 0
    %369 = vmatprep.subr.bf16.mxu0 0
    %370 = vmatpush2.bf16.msra.mxu0 0
    %371 = vmatprep.subr.bf16.mxu0 0
    %372 = vmatpush2.bf16.msra.mxu0 0
    %373 = vmatprep.subr.bf16.mxu0 0
    %374 = vmatpush2.bf16.msra.mxu0 0
    %375 = vmatprep.subr.bf16.mxu0 0
    %376 = vmatpush2.bf16.msra.mxu0 0
    %377 = vmatprep.subr.bf16.mxu0 0
    %378 = vmatpush2.bf16.msra.mxu0 0
    %379 = vmatprep.mubr.bf16.mxu0 0
    %380 = vmatmul.mubr.bf16.gmra.mxu0 %v345
    %v381 = vpop.f32.mrf.mxu0
    %v382 = vadd.f32 0.0, %v381
    %v383 = vpop.f32.mrf.mxu0
    %v384 = vadd.f32 0.0, %v383
    %v385 = vpop.f32.mrf.mxu0
    %v386 = vpop.f32.mrf.mxu0
    %387 = vdwg.mxu0
    %v390 = vrot.slane %v382, 7
    %v391 = vrot.slane %v384, 7
    %v396 = vadd.f32 %v287, %v390
    %v397 = vadd.f32 %v288, %v391
    %v398 = vadd.f32 %v289, %v382
    %v399 = vadd.f32 %v290, %v384
    %v400 = vxor.u32 %v396, 2147483648
    %v401 = vxor.u32 %v397, 2147483648
    %v402 = vxor.u32 %v398, 2147483648
    %v403 = vxor.u32 %v399, 2147483648
    %v404 = vmul.f32 %v400, 1.442695
    %v405 = vpow.pop %v404
    %v406 = vmul.f32 %v401, 1.442695
    %v407 = vpow.pop %v406
    %v408 = vmul.f32 %v402, 1.442695
    %v409 = vpow.pop %v408
    %v410 = vmul.f32 %v403, 1.442695
    %v411 = vpow.pop %v410
    %v412 = vadd.f32 %v405, 1.0
    %v413 = vadd.f32 %v407, 1.0
    %v414 = vadd.f32 %v409, 1.0
    %v415 = vadd.f32 %v411, 1.0
    %v416 = vrcp.pop %v412
    %v417 = vmul.f32 1.0, %v416
    %v418 = vrcp.pop %v413
    %v419 = vmul.f32 1.0, %v418
    %v420 = vrcp.pop %v414
    %v421 = vmul.f32 1.0, %v420
    %v422 = vrcp.pop %v415
    %v423 = vmul.f32 1.0, %v422
    %v424 = vtanh.pop %v397
    %v425 = vtanh.pop %v399
    %v428 = vrot.slane %v265, 7
    %v429 = vrot.slane %v266, 7
    %430 = vrot.lane.b32.xlu0 %v428, 64
    %v431 = vpop.permute.xlu0 %430
    %432 = vrot.lane.b32.xlu0 %v429, 64
    %v433 = vpop.permute.xlu0 %432
    %v436 = vmul.f32 %v417, %v431
    %v437 = vmul.f32 %v421, %v433
    %v438 = vmul.f32 %v417, %v424
    %v439 = vmul.f32 %v421, %v425
    %442 = vrot.lane.b32.xlu0 %v438, 64
    %v443 = vpop.permute.xlu0 %442
    %444 = vrot.lane.b32.xlu0 %v439, 64
    %v445 = vpop.permute.xlu0 %444
    %v448 = vadd.f32 %v436, %v443
    %v449 = vadd.f32 %v437, %v445
    %v450 = vtanh.pop %v448
    %v451 = vtanh.pop %v449
    %v452 = vmul.f32 %v419, %v450
    %v453 = vmul.f32 %v423, %v451
    %v456 = vrot.slane %v452, 1
    %v457 = vrot.slane %v453, 1
    %v460 = vmax.f32 %v277, %v456
    %v461 = vmax.f32 %v278, %v457
    %v462 = vrot.slane %v207, 3
    %v463 = vrot.slane %v209, 3
    %v464 = vrot.slane %v211, 3
    %v465 = vrot.slane %v213, 3
    %v470 = vadd.f32 %v164, %v462
    %v471 = vadd.f32 %v166, %v463
    %v472 = vadd.f32 %v168, %v464
    %v473 = vadd.f32 %v170, %v465
    %v474 = vpack.c.bf16 %v452, %v452
    %v475 = vpack.c.bf16 %v453, %v453
    %v478 = vunpack.c.l.b16 %v474
    %v479 = vunpack.c.l.b16 %v475
    %v480 = vrot.slane %v478, 1
    %v481 = vsel %vm298, %v479, %v480
    %v482 = vpack.c.b16 %v481, %v481
    %483 = vrot.lane.b32.xlu0 %v482, 64
    %v484 = vpop.permute.xlu0 %483
    %v486 = vsel %vm343, %v484, 0
    %488 = vmatprep.subr.bf16.mxu0 0
    %489 = vmatpush1.bf16.msra.mxu0 0
    %490 = vmatprep.subr.bf16.mxu0 0
    %491 = vmatpush1.bf16.msra.mxu0 0
    %492 = vmatprep.subr.bf16.mxu0 0
    %493 = vmatpush1.bf16.msra.mxu0 0
    %494 = vmatprep.subr.bf16.mxu0 0
    %495 = vmatpush1.bf16.msra.mxu0 0
    %496 = vmatprep.subr.bf16.mxu0 %v334
    %497 = vmatpush1.bf16.msra.mxu0 %v333
    %498 = vmatprep.subr.bf16.mxu0 %v332
    %499 = vmatpush1.bf16.msra.mxu0 %v331
    %500 = vmatprep.subr.bf16.mxu0 %v330
    %501 = vmatpush1.bf16.msra.mxu0 %v329
    %502 = vmatprep.subr.bf16.mxu0 %v328
    %503 = vmatpush1.bf16.msra.mxu0 %v327
    %504 = vmatprep.subr.bf16.mxu0 0
    %505 = vmatpush2.bf16.msra.mxu0 0
    %506 = vmatprep.subr.bf16.mxu0 0
    %507 = vmatpush2.bf16.msra.mxu0 0
    %508 = vmatprep.subr.bf16.mxu0 0
    %509 = vmatpush2.bf16.msra.mxu0 0
    %510 = vmatprep.subr.bf16.mxu0 0
    %511 = vmatpush2.bf16.msra.mxu0 0
    %512 = vmatprep.subr.bf16.mxu0 0
    %513 = vmatpush2.bf16.msra.mxu0 0
    %514 = vmatprep.subr.bf16.mxu0 0
    %515 = vmatpush2.bf16.msra.mxu0 0
    %516 = vmatprep.subr.bf16.mxu0 0
    %517 = vmatpush2.bf16.msra.mxu0 0
    %518 = vmatprep.subr.bf16.mxu0 0
    %519 = vmatpush2.bf16.msra.mxu0 0
    %520 = vmatprep.mubr.bf16.mxu0 0
    %521 = vmatmul.mubr.bf16.gmra.mxu0 %v486
    %v522 = vpop.f32.mrf.mxu0
    %v523 = vadd.f32 0.0, %v522
    %v524 = vpop.f32.mrf.mxu0
    %v525 = vadd.f32 0.0, %v524
    %v526 = vpop.f32.mrf.mxu0
    %v527 = vpop.f32.mrf.mxu0
    %528 = vdwg.mxu0
    %v531 = vrot.slane %v523, 6
    %v532 = vrot.slane %v525, 6
    %v533 = vrot.slane %v523, 7
    %v534 = vrot.slane %v525, 7
    %v539 = vadd.f32 %v470, %v531
    %v540 = vadd.f32 %v471, %v532
    %v541 = vadd.f32 %v472, %v533
    %v542 = vadd.f32 %v473, %v534
    %v543 = vxor.u32 %v539, 2147483648
    %v544 = vxor.u32 %v540, 2147483648
    %v545 = vxor.u32 %v541, 2147483648
    %v546 = vxor.u32 %v542, 2147483648
    %v547 = vmul.f32 %v543, 1.442695
    %v548 = vpow.pop %v547
    %v549 = vmul.f32 %v544, 1.442695
    %v550 = vpow.pop %v549
    %v551 = vmul.f32 %v545, 1.442695
    %v552 = vpow.pop %v551
    %v553 = vmul.f32 %v546, 1.442695
    %v554 = vpow.pop %v553
    %v555 = vadd.f32 %v548, 1.0
    %v556 = vadd.f32 %v550, 1.0
    %v557 = vadd.f32 %v552, 1.0
    %v558 = vadd.f32 %v554, 1.0
    %v559 = vrcp.pop %v555
    %v560 = vmul.f32 1.0, %v559
    %v561 = vrcp.pop %v556
    %v562 = vmul.f32 1.0, %v561
    %v563 = vrcp.pop %v557
    %v564 = vmul.f32 1.0, %v563
    %v565 = vrcp.pop %v558
    %v566 = vmul.f32 1.0, %v565
    %v567 = vtanh.pop %v540
    %v568 = vtanh.pop %v542
    %v571 = vrot.slane %v448, 7
    %v572 = vrot.slane %v449, 7
    %v575 = vmul.f32 %v560, %v571
    %v576 = vmul.f32 %v564, %v572
    %v577 = vmul.f32 %v560, %v567
    %v578 = vmul.f32 %v564, %v568
    %581 = vrot.lane.b32.xlu0 %v577, 64
    %v582 = vpop.permute.xlu0 %581
    %583 = vrot.lane.b32.xlu0 %v578, 64
    %v584 = vpop.permute.xlu0 %583
    %v587 = vadd.f32 %v575, %v582
    %v588 = vadd.f32 %v576, %v584
    %v589 = vtanh.pop %v587
    %v590 = vtanh.pop %v588
    %v591 = vmul.f32 %v562, %v589
    %v592 = vmul.f32 %v566, %v590
    %v595 = vrot.slane %v591, 2
    %v596 = vrot.slane %v592, 2
    %v599 = vmax.f32 %v460, %v595
    %v600 = vmax.f32 %v461, %v596
    %v601 = vrot.slane %v207, 1
    %v602 = vrot.slane %v209, 1
    %v603 = vrot.slane %v211, 1
    %v604 = vrot.slane %v213, 1
    %v609 = vadd.f32 %v164, %v601
    %v610 = vadd.f32 %v166, %v602
    %v611 = vadd.f32 %v168, %v603
    %v612 = vadd.f32 %v170, %v604
    %v613 = vpack.c.bf16 %v591, %v591
    %v614 = vpack.c.bf16 %v592, %v592
    %v617 = vunpack.c.l.b16 %v613
    %v618 = vunpack.c.l.b16 %v614
    %v619 = vrot.slane %v617, 2
    %v620 = vrot.slane %v618, 1
    %v621 = vsel %vm298, %v620, %v619
    %v622 = vpack.c.b16 %v621, %v621
    %623 = vrot.lane.b32.xlu0 %v622, 64
    %v624 = vpop.permute.xlu0 %623
    %v626 = vsel %vm343, %v624, 0
    %628 = vmatprep.subr.bf16.mxu0 0
    %629 = vmatpush1.bf16.msra.mxu0 0
    %630 = vmatprep.subr.bf16.mxu0 0
    %631 = vmatpush1.bf16.msra.mxu0 0
    %632 = vmatprep.subr.bf16.mxu0 0
    %633 = vmatpush1.bf16.msra.mxu0 0
    %634 = vmatprep.subr.bf16.mxu0 0
    %635 = vmatpush1.bf16.msra.mxu0 0
    %636 = vmatprep.subr.bf16.mxu0 %v334
    %637 = vmatpush1.bf16.msra.mxu0 %v333
    %638 = vmatprep.subr.bf16.mxu0 %v332
    %639 = vmatpush1.bf16.msra.mxu0 %v331
    %640 = vmatprep.subr.bf16.mxu0 %v330
    %641 = vmatpush1.bf16.msra.mxu0 %v329
    %642 = vmatprep.subr.bf16.mxu0 %v328
    %643 = vmatpush1.bf16.msra.mxu0 %v327
    %644 = vmatprep.subr.bf16.mxu0 0
    %645 = vmatpush2.bf16.msra.mxu0 0
    %646 = vmatprep.subr.bf16.mxu0 0
    %647 = vmatpush2.bf16.msra.mxu0 0
    %648 = vmatprep.subr.bf16.mxu0 0
    %649 = vmatpush2.bf16.msra.mxu0 0
    %650 = vmatprep.subr.bf16.mxu0 0
    %651 = vmatpush2.bf16.msra.mxu0 0
    %652 = vmatprep.subr.bf16.mxu0 0
    %653 = vmatpush2.bf16.msra.mxu0 0
    %654 = vmatprep.subr.bf16.mxu0 0
    %655 = vmatpush2.bf16.msra.mxu0 0
    %656 = vmatprep.subr.bf16.mxu0 0
    %657 = vmatpush2.bf16.msra.mxu0 0
    %658 = vmatprep.subr.bf16.mxu0 0
    %659 = vmatpush2.bf16.msra.mxu0 0
    %660 = vmatprep.mubr.bf16.mxu0 0
    %661 = vmatmul.mubr.bf16.gmra.mxu0 %v626
    %v662 = vpop.f32.mrf.mxu0
    %v663 = vadd.f32 0.0, %v662
    %v664 = vpop.f32.mrf.mxu0
    %v665 = vadd.f32 0.0, %v664
    %v666 = vpop.f32.mrf.mxu0
    %v667 = vpop.f32.mrf.mxu0
    %668 = vdwg.mxu0
    %v671 = vrot.slane %v663, 5
    %v672 = vrot.slane %v665, 5
    %v673 = vrot.slane %v663, 6
    %v674 = vrot.slane %v665, 6
    %v679 = vadd.f32 %v609, %v671
    %v680 = vadd.f32 %v610, %v672
    %v681 = vadd.f32 %v611, %v673
    %v682 = vadd.f32 %v612, %v674
    %v683 = vxor.u32 %v679, 2147483648
    %v684 = vxor.u32 %v680, 2147483648
    %v685 = vxor.u32 %v681, 2147483648
    %v686 = vxor.u32 %v682, 2147483648
    %v687 = vmul.f32 %v683, 1.442695
    %v688 = vpow.pop %v687
    %v689 = vmul.f32 %v684, 1.442695
    %v690 = vpow.pop %v689
    %v691 = vmul.f32 %v685, 1.442695
    %v692 = vpow.pop %v691
    %v693 = vmul.f32 %v686, 1.442695
    %v694 = vpow.pop %v693
    %v695 = vadd.f32 %v688, 1.0
    %v696 = vadd.f32 %v690, 1.0
    %v697 = vadd.f32 %v692, 1.0
    %v698 = vadd.f32 %v694, 1.0
    %v699 = vrcp.pop %v695
    %v700 = vmul.f32 1.0, %v699
    %v701 = vrcp.pop %v696
    %v702 = vmul.f32 1.0, %v701
    %v703 = vrcp.pop %v697
    %v704 = vmul.f32 1.0, %v703
    %v705 = vrcp.pop %v698
    %v706 = vmul.f32 1.0, %v705
    %v707 = vtanh.pop %v680
    %v708 = vtanh.pop %v682
    %v711 = vrot.slane %v587, 7
    %v712 = vrot.slane %v588, 7
    %v715 = vmul.f32 %v700, %v711
    %v716 = vmul.f32 %v704, %v712
    %v717 = vmul.f32 %v700, %v707
    %v718 = vmul.f32 %v704, %v708
    %721 = vrot.lane.b32.xlu0 %v717, 64
    %v722 = vpop.permute.xlu0 %721
    %723 = vrot.lane.b32.xlu0 %v718, 64
    %v724 = vpop.permute.xlu0 %723
    %v727 = vadd.f32 %v715, %v722
    %v728 = vadd.f32 %v716, %v724
    %v729 = vtanh.pop %v727
    %v730 = vtanh.pop %v728
    %v731 = vmul.f32 %v702, %v729
    %v732 = vmul.f32 %v706, %v730
    %v735 = vrot.slane %v731, 3
    %v736 = vrot.slane %v732, 3
    %v739 = vmax.f32 %v599, %v735
    %v740 = vmax.f32 %v600, %v736
    %v741 = vpack.c.bf16 %v731, %v731
    %v742 = vpack.c.bf16 %v732, %v732
    %v745 = vunpack.c.l.b16 %v741
    %v746 = vunpack.c.l.b16 %v742
    %v747 = vrot.slane %v745, 3
    %v748 = vrot.slane %v746, 2
    %v749 = vsel %vm298, %v748, %v747
    %v750 = vpack.c.b16 %v749, %v749
    %751 = vrot.lane.b32.xlu0 %v750, 64
    %v752 = vpop.permute.xlu0 %751
    %v754 = vsel %vm343, %v752, 0
    %756 = vmatprep.subr.bf16.mxu0 0
    %757 = vmatpush1.bf16.msra.mxu0 0
    %758 = vmatprep.subr.bf16.mxu0 0
    %759 = vmatpush1.bf16.msra.mxu0 0
    %760 = vmatprep.subr.bf16.mxu0 0
    %761 = vmatpush1.bf16.msra.mxu0 0
    %762 = vmatprep.subr.bf16.mxu0 0
    %763 = vmatpush1.bf16.msra.mxu0 0
    %764 = vmatprep.subr.bf16.mxu0 %v334
    %765 = vmatpush1.bf16.msra.mxu0 %v333
    %766 = vmatprep.subr.bf16.mxu0 %v332
    %767 = vmatpush1.bf16.msra.mxu0 %v331
    %768 = vmatprep.subr.bf16.mxu0 %v330
    %769 = vmatpush1.bf16.msra.mxu0 %v329
    %770 = vmatprep.subr.bf16.mxu0 %v328
    %771 = vmatpush1.bf16.msra.mxu0 %v327
    %772 = vmatprep.subr.bf16.mxu0 0
    %773 = vmatpush2.bf16.msra.mxu0 0
    %774 = vmatprep.subr.bf16.mxu0 0
    %775 = vmatpush2.bf16.msra.mxu0 0
    %776 = vmatprep.subr.bf16.mxu0 0
    %777 = vmatpush2.bf16.msra.mxu0 0
    %778 = vmatprep.subr.bf16.mxu0 0
    %779 = vmatpush2.bf16.msra.mxu0 0
    %780 = vmatprep.subr.bf16.mxu0 0
    %781 = vmatpush2.bf16.msra.mxu0 0
    %782 = vmatprep.subr.bf16.mxu0 0
    %783 = vmatpush2.bf16.msra.mxu0 0
    %784 = vmatprep.subr.bf16.mxu0 0
    %785 = vmatpush2.bf16.msra.mxu0 0
    %786 = vmatprep.subr.bf16.mxu0 0
    %787 = vmatpush2.bf16.msra.mxu0 0
    %788 = vmatprep.mubr.bf16.mxu0 0
    %789 = vmatmul.mubr.bf16.gmra.mxu0 %v754
    %v790 = vpop.f32.mrf.mxu0
    %v791 = vadd.f32 0.0, %v790
    %v792 = vpop.f32.mrf.mxu0
    %v793 = vadd.f32 0.0, %v792
    %v794 = vpop.f32.mrf.mxu0
    %v795 = vpop.f32.mrf.mxu0
    %796 = vdwg.mxu0
    %v799 = vrot.slane %v791, 4
    %v800 = vrot.slane %v793, 4
    %v801 = vrot.slane %v791, 5
    %v802 = vrot.slane %v793, 5
    %v807 = vadd.f32 %v235, %v799
    %v808 = vadd.f32 %v236, %v800
    %v809 = vadd.f32 %v237, %v801
    %v810 = vadd.f32 %v238, %v802
    %v811 = vxor.u32 %v807, 2147483648
    %v812 = vxor.u32 %v808, 2147483648
    %v813 = vxor.u32 %v809, 2147483648
    %v814 = vxor.u32 %v810, 2147483648
    %v815 = vmul.f32 %v811, 1.442695
    %v816 = vpow.pop %v815
    %v817 = vmul.f32 %v812, 1.442695
    %v818 = vpow.pop %v817
    %v819 = vmul.f32 %v813, 1.442695
    %v820 = vpow.pop %v819
    %v821 = vmul.f32 %v814, 1.442695
    %v822 = vpow.pop %v821
    %v823 = vadd.f32 %v816, 1.0
    %v824 = vadd.f32 %v818, 1.0
    %v825 = vadd.f32 %v820, 1.0
    %v826 = vadd.f32 %v822, 1.0
    %v827 = vrcp.pop %v823
    %v828 = vmul.f32 1.0, %v827
    %v829 = vrcp.pop %v824
    %v830 = vmul.f32 1.0, %v829
    %v831 = vrcp.pop %v825
    %v832 = vmul.f32 1.0, %v831
    %v833 = vrcp.pop %v826
    %v834 = vmul.f32 1.0, %v833
    %v835 = vtanh.pop %v808
    %v836 = vtanh.pop %v810
    %v839 = vrot.slane %v727, 7
    %v840 = vrot.slane %v728, 7
    %v843 = vmul.f32 %v828, %v839
    %v844 = vmul.f32 %v832, %v840
    %v845 = vmul.f32 %v828, %v835
    %v846 = vmul.f32 %v832, %v836
    %849 = vrot.lane.b32.xlu0 %v845, 64
    %v850 = vpop.permute.xlu0 %849
    %851 = vrot.lane.b32.xlu0 %v846, 64
    %v852 = vpop.permute.xlu0 %851
    %v855 = vadd.f32 %v843, %v850
    %v856 = vadd.f32 %v844, %v852
    %v857 = vtanh.pop %v855
    %v858 = vtanh.pop %v856
    %v859 = vmul.f32 %v830, %v857
    %v860 = vmul.f32 %v834, %v858
    %v863 = vrot.slane %v859, 4
    %v864 = vrot.slane %v860, 4
    %v867 = vmax.f32 %v739, %v863
    %v868 = vmax.f32 %v740, %v864
    %v869 = vpack.c.bf16 %v859, %v859
    %v870 = vpack.c.bf16 %v860, %v860
    %v873 = vunpack.c.l.b16 %v869
    %v874 = vunpack.c.l.b16 %v870
    %v875 = vrot.slane %v873, 4
    %v876 = vrot.slane %v874, 3
    %v877 = vsel %vm298, %v876, %v875
    %v878 = vpack.c.b16 %v877, %v877
    %879 = vrot.lane.b32.xlu0 %v878, 64
    %v880 = vpop.permute.xlu0 %879
    %v882 = vsel %vm343, %v880, 0
    %884 = vmatprep.subr.bf16.mxu0 0
    %885 = vmatpush1.bf16.msra.mxu0 0
    %886 = vmatprep.subr.bf16.mxu0 0
    %887 = vmatpush1.bf16.msra.mxu0 0
    %888 = vmatprep.subr.bf16.mxu0 0
    %889 = vmatpush1.bf16.msra.mxu0 0
    %890 = vmatprep.subr.bf16.mxu0 0
    %891 = vmatpush1.bf16.msra.mxu0 0
    %892 = vmatprep.subr.bf16.mxu0 %v334
    %893 = vmatpush1.bf16.msra.mxu0 %v333
    %894 = vmatprep.subr.bf16.mxu0 %v332
    %895 = vmatpush1.bf16.msra.mxu0 %v331
    %896 = vmatprep.subr.bf16.mxu0 %v330
    %897 = vmatpush1.bf16.msra.mxu0 %v329
    %898 = vmatprep.subr.bf16.mxu0 %v328
    %899 = vmatpush1.bf16.msra.mxu0 %v327
    %900 = vmatprep.subr.bf16.mxu0 0
    %901 = vmatpush2.bf16.msra.mxu0 0
    %902 = vmatprep.subr.bf16.mxu0 0
    %903 = vmatpush2.bf16.msra.mxu0 0
    %904 = vmatprep.subr.bf16.mxu0 0
    %905 = vmatpush2.bf16.msra.mxu0 0
    %906 = vmatprep.subr.bf16.mxu0 0
    %907 = vmatpush2.bf16.msra.mxu0 0
    %908 = vmatprep.subr.bf16.mxu0 0
    %909 = vmatpush2.bf16.msra.mxu0 0
    %910 = vmatprep.subr.bf16.mxu0 0
    %911 = vmatpush2.bf16.msra.mxu0 0
    %912 = vmatprep.subr.bf16.mxu0 0
    %913 = vmatpush2.bf16.msra.mxu0 0
    %914 = vmatprep.subr.bf16.mxu0 0
    %915 = vmatpush2.bf16.msra.mxu0 0
    %916 = vmatprep.mubr.bf16.mxu0 0
    %917 = vmatmul.mubr.bf16.gmra.mxu0 %v882
    %v918 = vpop.f32.mrf.mxu0
    %v919 = vadd.f32 0.0, %v918
    %v920 = vpop.f32.mrf.mxu0
    %v921 = vadd.f32 0.0, %v920
    %v922 = vpop.f32.mrf.mxu0
    %v923 = vpop.f32.mrf.mxu0
    %924 = vdwg.mxu0
    %v927 = vrot.slane %v919, 3
    %v928 = vrot.slane %v921, 3
    %v929 = vrot.slane %v919, 4
    %v930 = vrot.slane %v921, 4
    %v935 = vadd.f32 %v287, %v927
    %v936 = vadd.f32 %v288, %v928
    %v937 = vadd.f32 %v289, %v929
    %v938 = vadd.f32 %v290, %v930
    %v939 = vxor.u32 %v935, 2147483648
    %v940 = vxor.u32 %v936, 2147483648
    %v941 = vxor.u32 %v937, 2147483648
    %v942 = vxor.u32 %v938, 2147483648
    %v943 = vmul.f32 %v939, 1.442695
    %v944 = vpow.pop %v943
    %v945 = vmul.f32 %v940, 1.442695
    %v946 = vpow.pop %v945
    %v947 = vmul.f32 %v941, 1.442695
    %v948 = vpow.pop %v947
    %v949 = vmul.f32 %v942, 1.442695
    %v950 = vpow.pop %v949
    %v951 = vadd.f32 %v944, 1.0
    %v952 = vadd.f32 %v946, 1.0
    %v953 = vadd.f32 %v948, 1.0
    %v954 = vadd.f32 %v950, 1.0
    %v955 = vrcp.pop %v951
    %v956 = vmul.f32 1.0, %v955
    %v957 = vrcp.pop %v952
    %v958 = vmul.f32 1.0, %v957
    %v959 = vrcp.pop %v953
    %v960 = vmul.f32 1.0, %v959
    %v961 = vrcp.pop %v954
    %v962 = vmul.f32 1.0, %v961
    %v963 = vtanh.pop %v936
    %v964 = vtanh.pop %v938
    %v967 = vrot.slane %v855, 7
    %v968 = vrot.slane %v856, 7
    %v971 = vmul.f32 %v956, %v967
    %v972 = vmul.f32 %v960, %v968
    %v973 = vmul.f32 %v956, %v963
    %v974 = vmul.f32 %v960, %v964
    %977 = vrot.lane.b32.xlu0 %v973, 64
    %v978 = vpop.permute.xlu0 %977
    %979 = vrot.lane.b32.xlu0 %v974, 64
    %v980 = vpop.permute.xlu0 %979
    %v983 = vadd.f32 %v971, %v978
    %v984 = vadd.f32 %v972, %v980
    %v985 = vtanh.pop %v983
    %v986 = vtanh.pop %v984
    %v987 = vmul.f32 %v958, %v985
    %v988 = vmul.f32 %v962, %v986
    %v991 = vrot.slane %v987, 5
    %v992 = vrot.slane %v988, 5
    %v995 = vmax.f32 %v867, %v991
    %v996 = vmax.f32 %v868, %v992
    %v997 = vpack.c.bf16 %v987, %v987
    %v998 = vpack.c.bf16 %v988, %v988
    %v1001 = vunpack.c.l.b16 %v997
    %v1002 = vunpack.c.l.b16 %v998
    %v1003 = vrot.slane %v1001, 5
    %v1004 = vrot.slane %v1002, 4
    %v1005 = vsel %vm298, %v1004, %v1003
    %v1006 = vpack.c.b16 %v1005, %v1005
    %1007 = vrot.lane.b32.xlu0 %v1006, 64
    %v1008 = vpop.permute.xlu0 %1007
    %v1010 = vsel %vm343, %v1008, 0
    %1012 = vmatprep.subr.bf16.mxu0 0
    %1013 = vmatpush1.bf16.msra.mxu0 0
    %1014 = vmatprep.subr.bf16.mxu0 0
    %1015 = vmatpush1.bf16.msra.mxu0 0
    %1016 = vmatprep.subr.bf16.mxu0 0
    %1017 = vmatpush1.bf16.msra.mxu0 0
    %1018 = vmatprep.subr.bf16.mxu0 0
    %1019 = vmatpush1.bf16.msra.mxu0 0
    %1020 = vmatprep.subr.bf16.mxu0 %v334
    %1021 = vmatpush1.bf16.msra.mxu0 %v333
    %1022 = vmatprep.subr.bf16.mxu0 %v332
    %1023 = vmatpush1.bf16.msra.mxu0 %v331
    %1024 = vmatprep.subr.bf16.mxu0 %v330
    %1025 = vmatpush1.bf16.msra.mxu0 %v329
    %1026 = vmatprep.subr.bf16.mxu0 %v328
    %1027 = vmatpush1.bf16.msra.mxu0 %v327
    %1028 = vmatprep.subr.bf16.mxu0 0
    %1029 = vmatpush2.bf16.msra.mxu0 0
    %1030 = vmatprep.subr.bf16.mxu0 0
    %1031 = vmatpush2.bf16.msra.mxu0 0
    %1032 = vmatprep.subr.bf16.mxu0 0
    %1033 = vmatpush2.bf16.msra.mxu0 0
    %1034 = vmatprep.subr.bf16.mxu0 0
    %1035 = vmatpush2.bf16.msra.mxu0 0
    %1036 = vmatprep.subr.bf16.mxu0 0
    %1037 = vmatpush2.bf16.msra.mxu0 0
    %1038 = vmatprep.subr.bf16.mxu0 0
    %1039 = vmatpush2.bf16.msra.mxu0 0
    %1040 = vmatprep.subr.bf16.mxu0 0
    %1041 = vmatpush2.bf16.msra.mxu0 0
    %1042 = vmatprep.subr.bf16.mxu0 0
    %1043 = vmatpush2.bf16.msra.mxu0 0
    %1044 = vmatprep.mubr.bf16.mxu0 0
    %1045 = vmatmul.mubr.bf16.gmra.mxu0 %v1010
    %v1046 = vpop.f32.mrf.mxu0
    %v1047 = vadd.f32 0.0, %v1046
    %v1048 = vpop.f32.mrf.mxu0
    %v1049 = vadd.f32 0.0, %v1048
    %v1050 = vpop.f32.mrf.mxu0
    %v1051 = vpop.f32.mrf.mxu0
    %1052 = vdwg.mxu0
    %v1055 = vrot.slane %v1047, 2
    %v1056 = vrot.slane %v1049, 2
    %v1057 = vrot.slane %v1047, 3
    %v1058 = vrot.slane %v1049, 3
    %v1063 = vadd.f32 %v470, %v1055
    %v1064 = vadd.f32 %v471, %v1056
    %v1065 = vadd.f32 %v472, %v1057
    %v1066 = vadd.f32 %v473, %v1058
    %v1067 = vxor.u32 %v1063, 2147483648
    %v1068 = vxor.u32 %v1064, 2147483648
    %v1069 = vxor.u32 %v1065, 2147483648
    %v1070 = vxor.u32 %v1066, 2147483648
    %v1071 = vmul.f32 %v1067, 1.442695
    %v1072 = vpow.pop %v1071
    %v1073 = vmul.f32 %v1068, 1.442695
    %v1074 = vpow.pop %v1073
    %v1075 = vmul.f32 %v1069, 1.442695
    %v1076 = vpow.pop %v1075
    %v1077 = vmul.f32 %v1070, 1.442695
    %v1078 = vpow.pop %v1077
    %v1079 = vadd.f32 %v1072, 1.0
    %v1080 = vadd.f32 %v1074, 1.0
    %v1081 = vadd.f32 %v1076, 1.0
    %v1082 = vadd.f32 %v1078, 1.0
    %v1083 = vrcp.pop %v1079
    %v1084 = vmul.f32 1.0, %v1083
    %v1085 = vrcp.pop %v1080
    %v1086 = vmul.f32 1.0, %v1085
    %v1087 = vrcp.pop %v1081
    %v1088 = vmul.f32 1.0, %v1087
    %v1089 = vrcp.pop %v1082
    %v1090 = vmul.f32 1.0, %v1089
    %v1091 = vtanh.pop %v1064
    %v1092 = vtanh.pop %v1066
    %v1095 = vrot.slane %v983, 7
    %v1096 = vrot.slane %v984, 7
    %v1099 = vmul.f32 %v1084, %v1095
    %v1100 = vmul.f32 %v1088, %v1096
    %v1101 = vmul.f32 %v1084, %v1091
    %v1102 = vmul.f32 %v1088, %v1092
    %1105 = vrot.lane.b32.xlu0 %v1101, 64
    %v1106 = vpop.permute.xlu0 %1105
    %1107 = vrot.lane.b32.xlu0 %v1102, 64
    %v1108 = vpop.permute.xlu0 %1107
    %v1111 = vadd.f32 %v1099, %v1106
    %v1112 = vadd.f32 %v1100, %v1108
    %v1113 = vtanh.pop %v1111
    %v1114 = vtanh.pop %v1112
    %v1115 = vmul.f32 %v1086, %v1113
    %v1116 = vmul.f32 %v1090, %v1114
    %v1119 = vrot.slane %v1115, 6
    %v1120 = vrot.slane %v1116, 6
    %v1123 = vmax.f32 %v995, %v1119
    %v1124 = vmax.f32 %v996, %v1120
    %v1125 = vpack.c.bf16 %v1115, %v1115
    %v1126 = vpack.c.bf16 %v1116, %v1116
    %v1129 = vunpack.c.l.b16 %v1125
    %v1130 = vunpack.c.l.b16 %v1126
    %v1131 = vrot.slane %v1129, 6
    %v1132 = vrot.slane %v1130, 5
    %v1133 = vsel %vm298, %v1132, %v1131
    %v1134 = vpack.c.b16 %v1133, %v1133
    %1135 = vrot.lane.b32.xlu0 %v1134, 64
    %v1136 = vpop.permute.xlu0 %1135
    %v1138 = vsel %vm343, %v1136, 0
    %1140 = vmatprep.subr.bf16.mxu0 0
    %1141 = vmatpush1.bf16.msra.mxu0 0
    %1142 = vmatprep.subr.bf16.mxu0 0
    %1143 = vmatpush1.bf16.msra.mxu0 0
    %1144 = vmatprep.subr.bf16.mxu0 0
    %1145 = vmatpush1.bf16.msra.mxu0 0
    %1146 = vmatprep.subr.bf16.mxu0 0
    %1147 = vmatpush1.bf16.msra.mxu0 0
    %1148 = vmatprep.subr.bf16.mxu0 %v334
    %1149 = vmatpush1.bf16.msra.mxu0 %v333
    %1150 = vmatprep.subr.bf16.mxu0 %v332
    %1151 = vmatpush1.bf16.msra.mxu0 %v331
    %1152 = vmatprep.subr.bf16.mxu0 %v330
    %1153 = vmatpush1.bf16.msra.mxu0 %v329
    %1154 = vmatprep.subr.bf16.mxu0 %v328
    %1155 = vmatpush1.bf16.msra.mxu0 %v327
    %1156 = vmatprep.subr.bf16.mxu0 0
    %1157 = vmatpush2.bf16.msra.mxu0 0
    %1158 = vmatprep.subr.bf16.mxu0 0
    %1159 = vmatpush2.bf16.msra.mxu0 0
    %1160 = vmatprep.subr.bf16.mxu0 0
    %1161 = vmatpush2.bf16.msra.mxu0 0
    %1162 = vmatprep.subr.bf16.mxu0 0
    %1163 = vmatpush2.bf16.msra.mxu0 0
    %1164 = vmatprep.subr.bf16.mxu0 0
    %1165 = vmatpush2.bf16.msra.mxu0 0
    %1166 = vmatprep.subr.bf16.mxu0 0
    %1167 = vmatpush2.bf16.msra.mxu0 0
    %1168 = vmatprep.subr.bf16.mxu0 0
    %1169 = vmatpush2.bf16.msra.mxu0 0
    %1170 = vmatprep.subr.bf16.mxu0 0
    %1171 = vmatpush2.bf16.msra.mxu0 0
    %1172 = vmatprep.mubr.bf16.mxu0 0
    %1173 = vmatmul.mubr.bf16.gmra.mxu0 %v1138
    %v1174 = vpop.f32.mrf.mxu0
    %v1175 = vadd.f32 0.0, %v1174
    %v1176 = vpop.f32.mrf.mxu0
    %v1177 = vadd.f32 0.0, %v1176
    %v1178 = vpop.f32.mrf.mxu0
    %v1179 = vpop.f32.mrf.mxu0
    %1180 = vdwg.mxu0
    %v1183 = vrot.slane %v1175, 1
    %v1184 = vrot.slane %v1177, 1
    %v1185 = vrot.slane %v1175, 2
    %v1186 = vrot.slane %v1177, 2
    %v1191 = vadd.f32 %v609, %v1183
    %v1192 = vadd.f32 %v610, %v1184
    %v1193 = vadd.f32 %v611, %v1185
    %v1194 = vadd.f32 %v612, %v1186
    %v1195 = vxor.u32 %v1191, 2147483648
    %v1196 = vxor.u32 %v1192, 2147483648
    %v1197 = vxor.u32 %v1193, 2147483648
    %v1198 = vxor.u32 %v1194, 2147483648
    %v1199 = vmul.f32 %v1195, 1.442695
    %v1200 = vpow.pop %v1199
    %v1201 = vmul.f32 %v1196, 1.442695
    %v1202 = vpow.pop %v1201
    %v1203 = vmul.f32 %v1197, 1.442695
    %v1204 = vpow.pop %v1203
    %v1205 = vmul.f32 %v1198, 1.442695
    %v1206 = vpow.pop %v1205
    %v1207 = vadd.f32 %v1200, 1.0
    %v1208 = vadd.f32 %v1202, 1.0
    %v1209 = vadd.f32 %v1204, 1.0
    %v1210 = vadd.f32 %v1206, 1.0
    %v1211 = vrcp.pop %v1207
    %v1212 = vmul.f32 1.0, %v1211
    %v1213 = vrcp.pop %v1208
    %v1214 = vmul.f32 1.0, %v1213
    %v1215 = vrcp.pop %v1209
    %v1216 = vmul.f32 1.0, %v1215
    %v1217 = vrcp.pop %v1210
    %v1218 = vmul.f32 1.0, %v1217
    %v1219 = vtanh.pop %v1192
    %v1220 = vtanh.pop %v1194
    %v1223 = vrot.slane %v1111, 7
    %v1224 = vrot.slane %v1112, 7
    %v1227 = vmul.f32 %v1212, %v1223
    %v1228 = vmul.f32 %v1216, %v1224
    %v1229 = vmul.f32 %v1212, %v1219
    %v1230 = vmul.f32 %v1216, %v1220
    %1233 = vrot.lane.b32.xlu0 %v1229, 64
    %v1234 = vpop.permute.xlu0 %1233
    %1235 = vrot.lane.b32.xlu0 %v1230, 64
    %v1236 = vpop.permute.xlu0 %1235
    %v1239 = vadd.f32 %v1227, %v1234
    %v1240 = vadd.f32 %v1228, %v1236
    %v1241 = vtanh.pop %v1239
    %v1242 = vtanh.pop %v1240
    %v1243 = vmul.f32 %v1214, %v1241
    %v1244 = vmul.f32 %v1218, %v1242
    %v1247 = vrot.slane %v1243, 7
    %v1248 = vrot.slane %v1244, 7
    %v1251 = vmax.f32 %v1123, %v1247
    %v1252 = vmax.f32 %v1124, %v1248
    %vm1253 = vcmask 1043456
    %v1256 = vsel %vm1253, %v48, 0
    %v1258 = vsel %vm1253, %v49, 0
    %v1259 = vld [vmem:[%s4] sm:$0xf]
    %v1260 = vld [vmem:[%s4 + $0x4] sm:$0xf]
    %v1261 = vld [vmem:[%s4 + $0x8] sm:$0xf]
    %v1262 = vld [vmem:[%s4 + $0xc] sm:$0xf]
    %v1265 = vunpack.c.l.b16 %v1256
    %v1266 = vunpack.c.h.b16 %v1256
    %v1267 = vunpack.c.l.b16 %v1258
    %v1268 = vunpack.c.h.b16 %v1258
    %v1269 = vpack.c.b16 %v1265, %v1265
    %v1270 = vpack.c.b16 %v1266, %v1266
    %v1271 = vpack.c.b16 %v1267, %v1267
    %v1272 = vpack.c.b16 %v1268, %v1268
    %vm1273 = vsmask.f32 3328
    %vm1274 = vsmask.f32 7440
    %vm1275 = vmor %vm1273, %vm1274
    %v1277 = vshrl.u32 %v1269, 16
    %v1279 = vrot.slane %v1277, 4
    %v1280 = vshll.u32 %v1269, 16
    %v1282 = vrot.slane %v1280, 5
    %v1283 = vor.u32 %v1279, %v1282
    %v1284 = vrot.slane %v1283, 4
    %v1286 = vshll.u32 %v1270, 16
    %v1288 = vrot.slane %v1286, 5
    %v1289 = vsel %vm1275, %v1284, %v1288
    %v1291 = vshrl.u32 %v1271, 16
    %v1293 = vrot.slane %v1291, 4
    %v1294 = vshll.u32 %v1271, 16
    %v1296 = vrot.slane %v1294, 5
    %v1297 = vor.u32 %v1293, %v1296
    %v1298 = vrot.slane %v1297, 4
    %v1300 = vshll.u32 %v1272, 16
    %v1302 = vrot.slane %v1300, 5
    %v1303 = vsel %vm1275, %v1298, %v1302
    %s1304 = scalar_lea.vmem %s4, 16
    %v1305 = vld [vmem:[%s1304] sm:$0xf]
    %v1306 = vld [vmem:[%s1304 + $0x4] sm:$0xf]
    %v1307 = vld [vmem:[%s1304 + $0x8] sm:$0xf]
    %v1308 = vld [vmem:[%s1304 + $0xc] sm:$0xf]
    %v1309 = vunpack.c.l.b16 %v1289
    %v1310 = vunpack.c.l.b16 %v1303
    %v1311 = vpack.c.b16 %v1310, %v1309
    %v1316 = vunpack.c.l.b16 %v1305
    %v1317 = vunpack.c.l.b16 %v1306
    %v1318 = vunpack.c.l.b16 %v1307
    %v1319 = vunpack.c.l.b16 %v1308
    %v1320 = vpack.c.b16 %v1317, %v1316
    %v1321 = vpack.c.b16 %v1319, %v1318
    %v1325 = vsel %vm125, %v1311, 0
    %1327 = vmatprep.subr.bf16.mxu0 0
    %1328 = vmatpush1.bf16.msra.mxu0 0
    %1329 = vmatprep.subr.bf16.mxu0 0
    %1330 = vmatpush1.bf16.msra.mxu0 0
    %1331 = vmatprep.subr.bf16.mxu0 0
    %1332 = vmatpush1.bf16.msra.mxu0 0
    %1333 = vmatprep.subr.bf16.mxu0 0
    %1334 = vmatpush1.bf16.msra.mxu0 0
    %1335 = vmatprep.subr.bf16.mxu0 0
    %1336 = vmatpush1.bf16.msra.mxu0 0
    %1337 = vmatprep.subr.bf16.mxu0 0
    %1338 = vmatpush1.bf16.msra.mxu0 0
    %1339 = vmatprep.subr.bf16.mxu0 0
    %1340 = vmatpush1.bf16.msra.mxu0 %v1321
    %1341 = vmatprep.subr.bf16.mxu0 0
    %1342 = vmatpush1.bf16.msra.mxu0 %v1320
    %1343 = vmatprep.subr.bf16.mxu0 0
    %1344 = vmatpush2.bf16.msra.mxu0 0
    %1345 = vmatprep.subr.bf16.mxu0 0
    %1346 = vmatpush2.bf16.msra.mxu0 0
    %1347 = vmatprep.subr.bf16.mxu0 0
    %1348 = vmatpush2.bf16.msra.mxu0 0
    %1349 = vmatprep.subr.bf16.mxu0 0
    %1350 = vmatpush2.bf16.msra.mxu0 0
    %1351 = vmatprep.subr.bf16.mxu0 0
    %1352 = vmatpush2.bf16.msra.mxu0 0
    %1353 = vmatprep.subr.bf16.mxu0 0
    %1354 = vmatpush2.bf16.msra.mxu0 0
    %1355 = vmatprep.subr.bf16.mxu0 0
    %1356 = vmatpush2.bf16.msra.mxu0 0
    %1357 = vmatprep.subr.bf16.mxu0 0
    %1358 = vmatpush2.bf16.msra.mxu0 0
    %1359 = vmatprep.mubr.bf16.mxu0 0
    %1360 = vmatmul.mubr.bf16.gmra.mxu0 %v1325
    %v1361 = vpop.f32.mrf.mxu0
    %v1362 = vadd.f32 0.0, %v1361
    %v1363 = vpop.f32.mrf.mxu0
    %v1364 = vpop.f32.mrf.mxu0
    %v1365 = vadd.f32 0.0, %v1364
    %v1366 = vpop.f32.mrf.mxu0
    %1367 = vdwg.mxu0
    %v1368 = vpack.c.b16 %v1267, %v1265
    %v1373 = vunpack.c.l.b16 %v1259
    %v1374 = vunpack.c.l.b16 %v1260
    %v1375 = vunpack.c.l.b16 %v1261
    %v1376 = vunpack.c.l.b16 %v1262
    %v1377 = vpack.c.b16 %v1374, %v1373
    %v1378 = vpack.c.b16 %v1376, %v1375
    %v1382 = vsel %vm125, %v1368, 0
    %1384 = vmatprep.subr.bf16.mxu0 0
    %1385 = vmatpush1.bf16.msra.mxu0 0
    %1386 = vmatprep.subr.bf16.mxu0 0
    %1387 = vmatpush1.bf16.msra.mxu0 0
    %1388 = vmatprep.subr.bf16.mxu0 0
    %1389 = vmatpush1.bf16.msra.mxu0 0
    %1390 = vmatprep.subr.bf16.mxu0 0
    %1391 = vmatpush1.bf16.msra.mxu0 0
    %1392 = vmatprep.subr.bf16.mxu0 0
    %1393 = vmatpush1.bf16.msra.mxu0 0
    %1394 = vmatprep.subr.bf16.mxu0 0
    %1395 = vmatpush1.bf16.msra.mxu0 0
    %1396 = vmatprep.subr.bf16.mxu0 0
    %1397 = vmatpush1.bf16.msra.mxu0 %v1378
    %1398 = vmatprep.subr.bf16.mxu0 0
    %1399 = vmatpush1.bf16.msra.mxu0 %v1377
    %1400 = vmatprep.subr.bf16.mxu0 0
    %1401 = vmatpush2.bf16.msra.mxu0 0
    %1402 = vmatprep.subr.bf16.mxu0 0
    %1403 = vmatpush2.bf16.msra.mxu0 0
    %1404 = vmatprep.subr.bf16.mxu0 0
    %1405 = vmatpush2.bf16.msra.mxu0 0
    %1406 = vmatprep.subr.bf16.mxu0 0
    %1407 = vmatpush2.bf16.msra.mxu0 0
    %1408 = vmatprep.subr.bf16.mxu0 0
    %1409 = vmatpush2.bf16.msra.mxu0 0
    %1410 = vmatprep.subr.bf16.mxu0 0
    %1411 = vmatpush2.bf16.msra.mxu0 0
    %1412 = vmatprep.subr.bf16.mxu0 0
    %1413 = vmatpush2.bf16.msra.mxu0 0
    %1414 = vmatprep.subr.bf16.mxu0 0
    %1415 = vmatpush2.bf16.msra.mxu0 0
    %1416 = vmatprep.mubr.bf16.mxu0 0
    %1417 = vmatmul.mubr.bf16.gmra.mxu0 %v1382
    %v1418 = vpop.f32.mrf.mxu0
    %v1419 = vadd.f32 %v1362, %v1418
    %v1420 = vpop.f32.mrf.mxu0
    %v1421 = vpop.f32.mrf.mxu0
    %v1422 = vadd.f32 %v1365, %v1421
    %v1423 = vpop.f32.mrf.mxu0
    %1424 = vdwg.mxu0
    %vm1425 = vcmask 1042432
    %vm1426 = vcmask 1046532
    %vm1427 = vmor %vm1425, %vm1426
    %v1428 = vrot.slane %v1269, 5
    %v1429 = vrot.slane %v1428, 4
    %v1430 = vrot.slane %v1270, 5
    %v1431 = vsel %vm1427, %v1429, %v1430
    %v1432 = vrot.slane %v1271, 5
    %v1433 = vrot.slane %v1432, 4
    %v1434 = vrot.slane %v1272, 5
    %v1435 = vsel %vm1427, %v1433, %v1434
    %s1436 = scalar_lea.vmem %s4, 32
    %v1437 = vld [vmem:[%s1436] sm:$0xf]
    %v1438 = vld [vmem:[%s1436 + $0x4] sm:$0xf]
    %v1439 = vld [vmem:[%s1436 + $0x8] sm:$0xf]
    %v1440 = vld [vmem:[%s1436 + $0xc] sm:$0xf]
    %v1441 = vunpack.c.l.b16 %v1431
    %v1442 = vunpack.c.l.b16 %v1435
    %v1443 = vpack.c.b16 %v1442, %v1441
    %v1448 = vunpack.c.l.b16 %v1437
    %v1449 = vunpack.c.l.b16 %v1438
    %v1450 = vunpack.c.l.b16 %v1439
    %v1451 = vunpack.c.l.b16 %v1440
    %v1452 = vpack.c.b16 %v1449, %v1448
    %v1453 = vpack.c.b16 %v1451, %v1450
    %v1457 = vsel %vm125, %v1443, 0
    %1459 = vmatprep.subr.bf16.mxu0 0
    %1460 = vmatpush1.bf16.msra.mxu0 0
    %1461 = vmatprep.subr.bf16.mxu0 0
    %1462 = vmatpush1.bf16.msra.mxu0 0
    %1463 = vmatprep.subr.bf16.mxu0 0
    %1464 = vmatpush1.bf16.msra.mxu0 0
    %1465 = vmatprep.subr.bf16.mxu0 0
    %1466 = vmatpush1.bf16.msra.mxu0 0
    %1467 = vmatprep.subr.bf16.mxu0 0
    %1468 = vmatpush1.bf16.msra.mxu0 0
    %1469 = vmatprep.subr.bf16.mxu0 0
    %1470 = vmatpush1.bf16.msra.mxu0 0
    %1471 = vmatprep.subr.bf16.mxu0 0
    %1472 = vmatpush1.bf16.msra.mxu0 %v1453
    %1473 = vmatprep.subr.bf16.mxu0 0
    %1474 = vmatpush1.bf16.msra.mxu0 %v1452
    %1475 = vmatprep.subr.bf16.mxu0 0
    %1476 = vmatpush2.bf16.msra.mxu0 0
    %1477 = vmatprep.subr.bf16.mxu0 0
    %1478 = vmatpush2.bf16.msra.mxu0 0
    %1479 = vmatprep.subr.bf16.mxu0 0
    %1480 = vmatpush2.bf16.msra.mxu0 0
    %1481 = vmatprep.subr.bf16.mxu0 0
    %1482 = vmatpush2.bf16.msra.mxu0 0
    %1483 = vmatprep.subr.bf16.mxu0 0
    %1484 = vmatpush2.bf16.msra.mxu0 0
    %1485 = vmatprep.subr.bf16.mxu0 0
    %1486 = vmatpush2.bf16.msra.mxu0 0
    %1487 = vmatprep.subr.bf16.mxu0 0
    %1488 = vmatpush2.bf16.msra.mxu0 0
    %1489 = vmatprep.subr.bf16.mxu0 0
    %1490 = vmatpush2.bf16.msra.mxu0 0
    %1491 = vmatprep.mubr.bf16.mxu0 0
    %1492 = vmatmul.mubr.bf16.gmra.mxu0 %v1457
    %v1493 = vpop.f32.mrf.mxu0
    %v1494 = vadd.f32 0.0, %v1493
    %v1495 = vpop.f32.mrf.mxu0
    %v1496 = vpop.f32.mrf.mxu0
    %v1497 = vadd.f32 0.0, %v1496
    %v1498 = vpop.f32.mrf.mxu0
    %1499 = vdwg.mxu0
    %v1500 = vadd.f32 %v1419, %v1494
    %v1501 = vadd.f32 %v1422, %v1497
    %vm1502 = vsmask.f32 2304
    %vm1503 = vsmask.f32 6416
    %vm1504 = vmor %vm1502, %vm1503
    %v1505 = vrot.slane %v1277, 5
    %v1506 = vrot.slane %v1280, 6
    %v1507 = vor.u32 %v1505, %v1506
    %v1508 = vrot.slane %v1507, 4
    %v1509 = vshrl.u32 %v1270, 16
    %v1511 = vrot.slane %v1509, 5
    %v1512 = vrot.slane %v1286, 6
    %v1513 = vor.u32 %v1511, %v1512
    %v1514 = vsel %vm1504, %v1508, %v1513
    %v1515 = vrot.slane %v1291, 5
    %v1516 = vrot.slane %v1294, 6
    %v1517 = vor.u32 %v1515, %v1516
    %v1518 = vrot.slane %v1517, 4
    %v1519 = vshrl.u32 %v1272, 16
    %v1521 = vrot.slane %v1519, 5
    %v1522 = vrot.slane %v1300, 6
    %v1523 = vor.u32 %v1521, %v1522
    %v1524 = vsel %vm1504, %v1518, %v1523
    %s1525 = scalar_lea.vmem %s4, 48
    %v1526 = vld [vmem:[%s1525] sm:$0xf]
    %v1527 = vld [vmem:[%s1525 + $0x4] sm:$0xf]
    %v1528 = vld [vmem:[%s1525 + $0x8] sm:$0xf]
    %v1529 = vld [vmem:[%s1525 + $0xc] sm:$0xf]
    %v1530 = vunpack.c.l.b16 %v1514
    %v1531 = vunpack.c.l.b16 %v1524
    %v1532 = vpack.c.b16 %v1531, %v1530
    %v1537 = vunpack.c.l.b16 %v1526
    %v1538 = vunpack.c.l.b16 %v1527
    %v1539 = vunpack.c.l.b16 %v1528
    %v1540 = vunpack.c.l.b16 %v1529
    %v1541 = vpack.c.b16 %v1538, %v1537
    %v1542 = vpack.c.b16 %v1540, %v1539
    %v1546 = vsel %vm125, %v1532, 0
    %1548 = vmatprep.subr.bf16.mxu0 0
    %1549 = vmatpush1.bf16.msra.mxu0 0
    %1550 = vmatprep.subr.bf16.mxu0 0
    %1551 = vmatpush1.bf16.msra.mxu0 0
    %1552 = vmatprep.subr.bf16.mxu0 0
    %1553 = vmatpush1.bf16.msra.mxu0 0
    %1554 = vmatprep.subr.bf16.mxu0 0
    %1555 = vmatpush1.bf16.msra.mxu0 0
    %1556 = vmatprep.subr.bf16.mxu0 0
    %1557 = vmatpush1.bf16.msra.mxu0 0
    %1558 = vmatprep.subr.bf16.mxu0 0
    %1559 = vmatpush1.bf16.msra.mxu0 0
    %1560 = vmatprep.subr.bf16.mxu0 0
    %1561 = vmatpush1.bf16.msra.mxu0 %v1542
    %1562 = vmatprep.subr.bf16.mxu0 0
    %1563 = vmatpush1.bf16.msra.mxu0 %v1541
    %1564 = vmatprep.subr.bf16.mxu0 0
    %1565 = vmatpush2.bf16.msra.mxu0 0
    %1566 = vmatprep.subr.bf16.mxu0 0
    %1567 = vmatpush2.bf16.msra.mxu0 0
    %1568 = vmatprep.subr.bf16.mxu0 0
    %1569 = vmatpush2.bf16.msra.mxu0 0
    %1570 = vmatprep.subr.bf16.mxu0 0
    %1571 = vmatpush2.bf16.msra.mxu0 0
    %1572 = vmatprep.subr.bf16.mxu0 0
    %1573 = vmatpush2.bf16.msra.mxu0 0
    %1574 = vmatprep.subr.bf16.mxu0 0
    %1575 = vmatpush2.bf16.msra.mxu0 0
    %1576 = vmatprep.subr.bf16.mxu0 0
    %1577 = vmatpush2.bf16.msra.mxu0 0
    %1578 = vmatprep.subr.bf16.mxu0 0
    %1579 = vmatpush2.bf16.msra.mxu0 0
    %1580 = vmatprep.mubr.bf16.mxu0 0
    %1581 = vmatmul.mubr.bf16.gmra.mxu0 %v1546
    %v1582 = vpop.f32.mrf.mxu0
    %v1583 = vadd.f32 0.0, %v1582
    %v1584 = vpop.f32.mrf.mxu0
    %v1585 = vpop.f32.mrf.mxu0
    %v1586 = vadd.f32 0.0, %v1585
    %v1587 = vpop.f32.mrf.mxu0
    %1588 = vdwg.mxu0
    %v1589 = vadd.f32 %v1500, %v1583
    %v1590 = vadd.f32 %v1501, %v1586
    %vm1591 = vcmask 1041408
    %vm1592 = vcmask 1045508
    %vm1593 = vmor %vm1591, %vm1592
    %v1594 = vrot.slane %v1269, 6
    %v1595 = vrot.slane %v1594, 4
    %v1596 = vrot.slane %v1270, 6
    %v1597 = vsel %vm1593, %v1595, %v1596
    %v1598 = vrot.slane %v1271, 6
    %v1599 = vrot.slane %v1598, 4
    %v1600 = vrot.slane %v1272, 6
    %v1601 = vsel %vm1593, %v1599, %v1600
    %s1602 = scalar_lea.vmem %s4, 64
    %v1603 = vld [vmem:[%s1602] sm:$0xf]
    %v1604 = vld [vmem:[%s1602 + $0x4] sm:$0xf]
    %v1605 = vld [vmem:[%s1602 + $0x8] sm:$0xf]
    %v1606 = vld [vmem:[%s1602 + $0xc] sm:$0xf]
    %v1607 = vunpack.c.l.b16 %v1597
    %v1608 = vunpack.c.l.b16 %v1601
    %v1609 = vpack.c.b16 %v1608, %v1607
    %v1614 = vunpack.c.l.b16 %v1603
    %v1615 = vunpack.c.l.b16 %v1604
    %v1616 = vunpack.c.l.b16 %v1605
    %v1617 = vunpack.c.l.b16 %v1606
    %v1618 = vpack.c.b16 %v1615, %v1614
    %v1619 = vpack.c.b16 %v1617, %v1616
    %v1623 = vsel %vm125, %v1609, 0
    %1625 = vmatprep.subr.bf16.mxu0 0
    %1626 = vmatpush1.bf16.msra.mxu0 0
    %1627 = vmatprep.subr.bf16.mxu0 0
    %1628 = vmatpush1.bf16.msra.mxu0 0
    %1629 = vmatprep.subr.bf16.mxu0 0
    %1630 = vmatpush1.bf16.msra.mxu0 0
    %1631 = vmatprep.subr.bf16.mxu0 0
    %1632 = vmatpush1.bf16.msra.mxu0 0
    %1633 = vmatprep.subr.bf16.mxu0 0
    %1634 = vmatpush1.bf16.msra.mxu0 0
    %1635 = vmatprep.subr.bf16.mxu0 0
    %1636 = vmatpush1.bf16.msra.mxu0 0
    %1637 = vmatprep.subr.bf16.mxu0 0
    %1638 = vmatpush1.bf16.msra.mxu0 %v1619
    %1639 = vmatprep.subr.bf16.mxu0 0
    %1640 = vmatpush1.bf16.msra.mxu0 %v1618
    %1641 = vmatprep.subr.bf16.mxu0 0
    %1642 = vmatpush2.bf16.msra.mxu0 0
    %1643 = vmatprep.subr.bf16.mxu0 0
    %1644 = vmatpush2.bf16.msra.mxu0 0
    %1645 = vmatprep.subr.bf16.mxu0 0
    %1646 = vmatpush2.bf16.msra.mxu0 0
    %1647 = vmatprep.subr.bf16.mxu0 0
    %1648 = vmatpush2.bf16.msra.mxu0 0
    %1649 = vmatprep.subr.bf16.mxu0 0
    %1650 = vmatpush2.bf16.msra.mxu0 0
    %1651 = vmatprep.subr.bf16.mxu0 0
    %1652 = vmatpush2.bf16.msra.mxu0 0
    %1653 = vmatprep.subr.bf16.mxu0 0
    %1654 = vmatpush2.bf16.msra.mxu0 0
    %1655 = vmatprep.subr.bf16.mxu0 0
    %1656 = vmatpush2.bf16.msra.mxu0 0
    %1657 = vmatprep.mubr.bf16.mxu0 0
    %1658 = vmatmul.mubr.bf16.gmra.mxu0 %v1623
    %v1659 = vpop.f32.mrf.mxu0
    %v1660 = vadd.f32 0.0, %v1659
    %v1661 = vpop.f32.mrf.mxu0
    %v1662 = vpop.f32.mrf.mxu0
    %v1663 = vadd.f32 0.0, %v1662
    %v1664 = vpop.f32.mrf.mxu0
    %1665 = vdwg.mxu0
    %v1666 = vadd.f32 %v1589, %v1660
    %v1667 = vadd.f32 %v1590, %v1663
    %v1668 = vld [vmem:[%s5] sm:$0x1]
    %v1670 = vlaneseq
    %v1671 = vshrl.u32 %v1670, 7
    %v1672 = vsub.s32 0, %v1671
    %v1673 = vrot.slane %v1668, %v1672
    %v1675 = vadd.f32 %v1666, %v1673
    %v1676 = vadd.f32 %v1667, %v1673
    %v1677 = vmax.f32 %v1675, 0.0
    %v1678 = vmax.f32 %v1676, 0.0
    %v1679 = vlaneseq
    %v1680 = vshrl.u32 %v1679, 7
    %v1681 = vld [vmem:[%s6] sm:$0x1]
    %v1682 = vlaneseq
    %v1683 = vshrl.u32 %v1682, 7
    %v1684 = vsub.s32 0, %v1683
    %v1685 = vrot.slane %v1681, %v1684
    %vm1686 = vcmp.lt.s32.totalorder %v1680, %v1685
    %v1687 = vsel %vm1686, 1, 0
    %vm1688 = vcmp.eq.s32.totalorder %v1687, 1
    %v1689 = vsel %vm1688, %v1677, 0.0
    %v1690 = vsel %vm1688, %v1678, 0.0
    %v1691 = vsel %vm343, %v1689, -inf
    %v1692 = vrot.slane %v1691, 4
    %v1693 = vmax.f32 %v1691, %v1692
    %v1694 = vrot.slane %v1693, 2
    %v1695 = vmax.f32 %v1693, %v1694
    %v1696 = vrot.slane %v1695, 1
    %v1697 = vmax.f32 %v1695, %v1696
    %v1698 = vsel %vm343, %v1690, -inf
    %v1699 = vrot.slane %v1698, 4
    %v1700 = vmax.f32 %v1698, %v1699
    %v1701 = vrot.slane %v1700, 2
    %v1702 = vmax.f32 %v1700, %v1701
    %v1703 = vrot.slane %v1702, 1
    %v1704 = vmax.f32 %v1702, %v1703
    %v1707 = vrot.slane %v1252, 7
    %v1708 = vsel %vm298, %v1707, %v1251
    %1709 = vrot.lane.b32.xlu0 %v1708, 64
    %v1710 = vpop.permute.xlu0 %1709
    %v1714 = vsel %vm298, %v1704, %v1697
    %1715 = vrot.lane.b32.xlu0 %v1714, 64
    %v1716 = vpop.permute.xlu0 %1715
    %v1718 = vsel %vm343, %v1710, %v1716
    %v1719 = vpack.c.bf16 %v1718, %v1718
    %v1720 = vld [vmem:[%s7] sm:$0xf]
    %v1721 = vld [vmem:[%s7 + $0x4] sm:$0xf]
    %v1722 = vld [vmem:[%s7 + $0x8] sm:$0xf]
    %v1723 = vld [vmem:[%s7 + $0xc] sm:$0xf]
    %v1724 = vld [vmem:[%s7 + $0x10] sm:$0xf]
    %v1725 = vld [vmem:[%s7 + $0x14] sm:$0xf]
    %v1726 = vld [vmem:[%s7 + $0x18] sm:$0xf]
    %v1727 = vld [vmem:[%s7 + $0x1c] sm:$0xf]
    %v1728 = vld [vmem:[%s7 + $0x20] sm:$0xf]
    %v1729 = vld [vmem:[%s7 + $0x24] sm:$0xf]
    %v1730 = vld [vmem:[%s7 + $0x28] sm:$0xf]
    %v1731 = vld [vmem:[%s7 + $0x2c] sm:$0xf]
    %v1732 = vld [vmem:[%s7 + $0x30] sm:$0xf]
    %v1733 = vld [vmem:[%s7 + $0x34] sm:$0xf]
    %v1734 = vld [vmem:[%s7 + $0x38] sm:$0xf]
    %v1735 = vld [vmem:[%s7 + $0x3c] sm:$0xf]
    %v1736 = vld [vmem:[%s8] sm:$0x1]
    %v1738 = vlaneseq
    %v1739 = vshrl.u32 %v1738, 7
    %v1740 = vsub.s32 0, %v1739
    %v1741 = vrot.slane %v1736, %v1740
    %v1759 = vunpack.c.l.b16 %v1720
    %v1760 = vunpack.c.l.b16 %v1721
    %v1761 = vunpack.c.l.b16 %v1722
    %v1762 = vunpack.c.l.b16 %v1723
    %v1763 = vunpack.c.l.b16 %v1724
    %v1764 = vunpack.c.l.b16 %v1725
    %v1765 = vunpack.c.l.b16 %v1726
    %v1766 = vunpack.c.l.b16 %v1727
    %v1767 = vunpack.c.l.b16 %v1728
    %v1768 = vunpack.c.l.b16 %v1729
    %v1769 = vunpack.c.l.b16 %v1730
    %v1770 = vunpack.c.l.b16 %v1731
    %v1771 = vunpack.c.l.b16 %v1732
    %v1772 = vunpack.c.l.b16 %v1733
    %v1773 = vunpack.c.l.b16 %v1734
    %v1774 = vunpack.c.l.b16 %v1735
    %v1775 = vpack.c.b16 %v1760, %v1759
    %v1776 = vpack.c.b16 %v1762, %v1761
    %v1777 = vpack.c.b16 %v1764, %v1763
    %v1778 = vpack.c.b16 %v1766, %v1765
    %v1779 = vpack.c.b16 %v1768, %v1767
    %v1780 = vpack.c.b16 %v1770, %v1769
    %v1781 = vpack.c.b16 %v1772, %v1771
    %v1782 = vpack.c.b16 %v1774, %v1773
    %1791 = vmatprep.subr.bf16.mxu0 0
    %1792 = vmatpush1.bf16.msra.mxu0 %v1782
    %1793 = vmatprep.subr.bf16.mxu0 0
    %1794 = vmatpush1.bf16.msra.mxu0 %v1781
    %1795 = vmatprep.subr.bf16.mxu0 0
    %1796 = vmatpush1.bf16.msra.mxu0 %v1780
    %1797 = vmatprep.subr.bf16.mxu0 0
    %1798 = vmatpush1.bf16.msra.mxu0 %v1779
    %1799 = vmatprep.subr.bf16.mxu0 0
    %1800 = vmatpush1.bf16.msra.mxu0 %v1778
    %1801 = vmatprep.subr.bf16.mxu0 0
    %1802 = vmatpush1.bf16.msra.mxu0 %v1777
    %1803 = vmatprep.subr.bf16.mxu0 0
    %1804 = vmatpush1.bf16.msra.mxu0 %v1776
    %1805 = vmatprep.subr.bf16.mxu0 0
    %1806 = vmatpush1.bf16.msra.mxu0 %v1775
    %1807 = vmatprep.subr.bf16.mxu0 0
    %1808 = vmatpush2.bf16.msra.mxu0 0
    %1809 = vmatprep.subr.bf16.mxu0 0
    %1810 = vmatpush2.bf16.msra.mxu0 0
    %1811 = vmatprep.subr.bf16.mxu0 0
    %1812 = vmatpush2.bf16.msra.mxu0 0
    %1813 = vmatprep.subr.bf16.mxu0 0
    %1814 = vmatpush2.bf16.msra.mxu0 0
    %1815 = vmatprep.subr.bf16.mxu0 0
    %1816 = vmatpush2.bf16.msra.mxu0 0
    %1817 = vmatprep.subr.bf16.mxu0 0
    %1818 = vmatpush2.bf16.msra.mxu0 0
    %1819 = vmatprep.subr.bf16.mxu0 0
    %1820 = vmatpush2.bf16.msra.mxu0 0
    %1821 = vmatprep.subr.bf16.mxu0 0
    %1822 = vmatpush2.bf16.msra.mxu0 0
    %1823 = vmatprep.mubr.bf16.mxu0 0
    %1824 = vmatmul.mubr.bf16.gmra.mxu0 %v1719
    %v1825 = vpop.f32.mrf.mxu0
    %v1826 = vadd.f32 %v1741, %v1825
    %v1827 = vpop.f32.mrf.mxu0
    %v1828 = vpop.f32.mrf.mxu0
    %v1829 = vpop.f32.mrf.mxu0
    %1830 = vdwg.mxu0
    %vm1831 = vcmask 33792
    %1832 = vst.msk [vmem:[#allocation5] sm:$0x3] %vm1831, %v1826
    // Predicated region
    $region42: #{cnn_lstm_forward.1} parent=1 // pred_check
      _
    $region43: #{cnn_lstm_forward.1} parent=1 // pred_check_branch
      %1834 = sbr.rel (0) target = $region45
    $region44: #{cnn_lstm_forward.1} parent=1 // pred_region
      %s1836 = ssub.s32 32, 32
      %1837 = vsyncadd [#allocation4], %s1836
      %s1839 = sshll.u32 [#allocation5], 4
      %s1840 = int_to_ptr.vmem [resolvable:$true] %s1839
      %1842 = dma.vmem_to_hbm [thread:$0]  %s1840, 32, %s9, [#allocation4]
    $region45: #{cnn_lstm_forward.1} parent=1 // pred_fallthru
      _
    // Predicated region
    $region46: #{cnn_lstm_forward.1} parent=1 // pred_check
      _
    $region47: #{cnn_lstm_forward.1} parent=1 // pred_check_branch
      %1844 = sbr.rel (0) target = $region49
    $region48: #{cnn_lstm_forward.1} parent=1 // pred_region
      %1845 = dma.done [#allocation4], 32
    $region49: #{cnn_lstm_forward.1} parent=1 // pred_fallthru
      _
    %1846 = vsyncpa [#allocation3], 1
    %1847 = vsyncpa [#allocation4], 1

</llo_original>
